<compile_context>
chip_gen: v7x
topology: tpu7x:2x2x1
jax: 0.10.0
libtpu: 0.0.40
codegen_flags: <defaults>
</compile_context>

<pallas_src>
import functools

import jax
import jax.numpy as jnp
from jax.experimental import pallas as pl
from jax.experimental.pallas import tpu as pltpu


def _round_up(a, b):
    return (a + b - 1) // b * b


def vae_kernel(x_ref, eps_ref,
               w1_ref, b1_ref,        # encoder Linear(input_dim, 256)
               wh_ref, bh_ref,        # fused encoder-Linear(256,128) @ [mu|logvar], 128 lanes
               wd_ref, bd_ref,        # fused latent_mapping @ decoder-Linear(128,256)
               w4_ref, b4_ref,        # decoder Linear(256, input_dim), padded to 128 lanes
               out_ref, head_ref,
               *, latent_dim):
    f32 = jnp.float32
    bf16 = jnp.bfloat16

    x = x_ref[...]       # bf16 (TB, input_dim)
    eps = eps_ref[...]   # f32  (TB, latent_dim)

    # encoder first layer: Linear -> ReLU   (bf16 MXU operands, f32 accumulate)
    h = jnp.dot(x, w1_ref[...], preferred_element_type=f32) + b1_ref[...]
    h = jnp.maximum(h, 0.0)

    # fused (encoder Linear(256,128) -> mu|logvar) head; lane-dense 128-wide result
    y = jnp.dot(h.astype(bf16), wh_ref[...], preferred_element_type=f32) + bh_ref[...]
    mu = y[:, :latent_dim]
    logvar = y[:, latent_dim:2 * latent_dim]

    # reparameterization: z = mu + eps * exp(0.5 * logvar)   (f32 on VPU/EUP)
    z = mu + eps * jnp.exp(0.5 * logvar)

    # fused (latent_mapping -> decoder Linear(128,256)) -> ReLU -> final Linear
    d = jnp.dot(z.astype(bf16), wd_ref[...], preferred_element_type=f32) + bd_ref[...]
    d = jnp.maximum(d, 0.0)
    out = jnp.dot(d.astype(bf16), w4_ref[...], preferred_element_type=f32) + b4_ref[...]

    out_ref[...] = out    # (TB, out_pad)   lane-dense store
    head_ref[...] = y     # (TB, head_pad)  lane-dense store, [mu | logvar | 0]


def pack_params(params, input_dim, latent_dim):
    """Fuse linear pairs that have no intervening nonlinearity, pad narrow lane dims
    to 128, and cast matmul weights to bf16 (fusion is done in f32)."""
    (w1, b1, w2, b2, wmu, bmu, wlv, blv, wlm, blm, w3, b3, w4, b4) = params

    head_pad = max(128, _round_up(2 * latent_dim, 128))
    out_pad = max(128, _round_up(input_dim, 128))

    # fused head: h1 @ (W2 @ [Wmu|Wlv]) + (b2 @ [Wmu|Wlv] + [bmu|blv])
    wh = jnp.zeros((w2.shape[0], head_pad), jnp.float32)
    wh = wh.at[:, :latent_dim].set(w2 @ wmu)
    wh = wh.at[:, latent_dim:2 * latent_dim].set(w2 @ wlv)
    bh = jnp.zeros((1, head_pad), jnp.float32)
    bh = bh.at[:, :latent_dim].set(b2 @ wmu + bmu)
    bh = bh.at[:, latent_dim:2 * latent_dim].set(b2 @ wlv + blv)

    # fused decoder entry: z @ (Wlm @ W3) + (blm @ W3 + b3)
    wd = wlm @ w3                      # (latent_dim, 256)
    bd = blm @ w3 + b3                 # (1, 256)

    # final layer padded to 128 output lanes
    w4p = jnp.zeros((w4.shape[0], out_pad), jnp.float32).at[:, :input_dim].set(w4)
    b4p = jnp.zeros((1, out_pad), jnp.float32).at[:, :input_dim].set(b4)

    bf16 = jnp.bfloat16
    packed = (w1.astype(bf16), b1,
              wh.astype(bf16), bh,
              wd.astype(bf16), bd,
              w4p.astype(bf16), b4p)
    return packed, head_pad, out_pad


def vae_forward(x, eps, params, *, tb=256):
    B, input_dim = x.shape
    latent_dim = eps.shape[1]

    packed, head_pad, out_pad = pack_params(params, input_dim, latent_dim)

    # batch tiling: TB rows per grid step (multiple of 8 sublanes)
    TB = min(tb, _round_up(B, 8))
    B_pad = _round_up(B, TB)
    if B_pad != B:
        x = jnp.pad(x, ((0, B_pad - B), (0, 0)))
        eps = jnp.pad(eps, ((0, B_pad - B), (0, 0)))
    x = x.astype(jnp.bfloat16)   # MXU operand; halves activation DMA bytes

    grid = (B_pad // TB,)

    def act_spec(n):
        return pl.BlockSpec((TB, n), lambda i: (i, 0))

    def w_spec(shape):
        # same block for every grid step -> weight stays VMEM-resident
        return pl.BlockSpec(shape, lambda i: (0, 0))

    in_specs = [act_spec(input_dim), act_spec(latent_dim)]
    in_specs += [w_spec(p.shape) for p in packed]

    out_shapes = (
        jax.ShapeDtypeStruct((B_pad, out_pad), jnp.float32),   # padded reconstruction
        jax.ShapeDtypeStruct((B_pad, head_pad), jnp.float32),  # packed [mu | logvar | 0]
    )
    out_specs = (act_spec(out_pad), act_spec(head_pad))

    kernel = functools.partial(vae_kernel, latent_dim=latent_dim)

    out_p, head_p = pl.pallas_call(
        kernel,
        grid=grid,
        out_shape=out_shapes,
        in_specs=in_specs,
        out_specs=out_specs,
        compiler_params=pltpu.CompilerParams(
            dimension_semantics=("parallel",)),   # dual-TC sharding on v7x; no-op on v5e/v6e
    )(x, eps, *packed)

    out = out_p[:B, :input_dim]
    mu = head_p[:B, :latent_dim]
    logvar = head_p[:B, latent_dim:2 * latent_dim]
    return out, mu, logvar


def make_linear_params(key, fan_in, fan_out):
    # deterministic init, roughly matching PyTorch's U(-1/sqrt(fan_in), 1/sqrt(fan_in))
    kw, kb = jax.random.split(key)
    bound = 1.0 / jnp.sqrt(jnp.float32(fan_in))
    w = jax.random.uniform(kw, (fan_in, fan_out), jnp.float32, -bound, bound)
    b = jax.random.uniform(kb, (1, fan_out), jnp.float32, -bound, bound)
    return w, b


def reference_mirror(x, eps, params, input_dim, latent_dim):
    """Pure-JAX reference with numerics identical to the kernel (fused weights,
    bf16 matmul operands, f32 accumulation)."""
    packed, head_pad, out_pad = pack_params(params, input_dim, latent_dim)
    w1, b1, wh, bh, wd, bd, w4, b4 = packed
    f32, bf16 = jnp.float32, jnp.bfloat16

    h = jnp.maximum(jnp.dot(x.astype(bf16), w1, preferred_element_type=f32) + b1, 0.0)
    y = jnp.dot(h.astype(bf16), wh, preferred_element_type=f32) + bh
    mu = y[:, :latent_dim]
    logvar = y[:, latent_dim:2 * latent_dim]
    z = mu + eps * jnp.exp(0.5 * logvar)
    d = jnp.maximum(jnp.dot(z.astype(bf16), wd, preferred_element_type=f32) + bd, 0.0)
    out = jnp.dot(d.astype(bf16), w4, preferred_element_type=f32) + b4
    return out[:, :input_dim], mu, logvar


def reference_f32(x, eps, params):
    """Unfused full-f32 reference matching the original PyTorch module math."""
    (w1, b1, w2, b2, wmu, bmu, wlv, blv, wlm, blm, w3, b3, w4, b4) = params
    hi = jax.lax.Precision.HIGHEST

    def mm(a, w):
        return jnp.dot(a, w, precision=hi)

    h = jnp.maximum(mm(x, w1) + b1, 0.0)
    h = mm(h, w2) + b2
    mu = mm(h, wmu) + bmu
    logvar = mm(h, wlv) + blv
    z = mu + eps * jnp.exp(0.5 * logvar)
    lz = mm(z, wlm) + blm
    d = jnp.maximum(mm(lz, w3) + b3, 0.0)
    out = mm(d, w4) + b4
    return out, mu, logvar


if __name__ == "__main__":
    key = jax.random.PRNGKey(0)

    B = 512            # 2 grid steps of 256 rows -> exercises the batch pipeline
    input_dim = 32
    latent_dim = 16

    keys = jax.random.split(key, 10)

    x = jax.random.normal(keys[0], (B, input_dim), jnp.float32)
    # TODO(synk): torch.randn_like inside sample_z is replaced by an externally drawn
    # eps so the forward pass is deterministic/reproducible.
    eps = jax.random.normal(keys[1], (B, latent_dim), jnp.float32)

    w1, b1 = make_linear_params(keys[2], input_dim, 256)
    w2, b2 = make_linear_params(keys[3], 256, 128)
    wmu, bmu = make_linear_params(keys[4], 128, latent_dim)
    wlv, blv = make_linear_params(keys[5], 128, latent_dim)
    wlm, blm = make_linear_params(keys[6], latent_dim, 128)
    w3, b3 = make_linear_params(keys[7], 128, 256)
    w4, b4 = make_linear_params(keys[8], 256, input_dim)

    params = (w1, b1, w2, b2, wmu, bmu, wlv, blv, wlm, blm, w3, b3, w4, b4)

    out, mu, logvar = vae_forward(x, eps, params)
    jax.block_until_ready((out, mu, logvar))
    assert out.shape == (B, input_dim) and mu.shape == (B, latent_dim)

    # 1) tight check against a pure-JAX reference with identical (fused bf16) numerics
    m_out, m_mu, m_lv = reference_mirror(x, eps, params, input_dim, latent_dim)
    assert jnp.allclose(out, m_out, atol=1e-3, rtol=1e-3)
    assert jnp.allclose(mu, m_mu, atol=1e-3, rtol=1e-3)
    assert jnp.allclose(logvar, m_lv, atol=1e-3, rtol=1e-3)

    # 2) loose check against the original module's full-f32 math (bf16 quantization noise)
    f_out, f_mu, f_lv = reference_f32(x, eps, params)
    assert jnp.allclose(out, f_out, atol=5e-2, rtol=5e-2)
    assert jnp.allclose(mu, f_mu, atol=5e-2, rtol=5e-2)
    assert jnp.allclose(logvar, f_lv, atol=5e-2, rtol=5e-2)

    print("KERNEL_OK")
</pallas_src>

<mosaic_0001>
module attributes {stable_mosaic.version = 11 : i64} {
  func.func @vae_kernel(%arg0: i32, %arg1: memref<256x32xbf16, #tpu.memory_space<vmem>>, %arg2: memref<256x16xf32, #tpu.memory_space<vmem>>, %arg3: memref<32x256xbf16, #tpu.memory_space<vmem>>, %arg4: memref<1x256xf32, #tpu.memory_space<vmem>>, %arg5: memref<256x128xbf16, #tpu.memory_space<vmem>>, %arg6: memref<1x128xf32, #tpu.memory_space<vmem>>, %arg7: memref<16x256xbf16, #tpu.memory_space<vmem>>, %arg8: memref<1x256xf32, #tpu.memory_space<vmem>>, %arg9: memref<256x128xbf16, #tpu.memory_space<vmem>>, %arg10: memref<1x128xf32, #tpu.memory_space<vmem>>, %arg11: memref<256x128xf32, #tpu.memory_space<vmem>>, %arg12: memref<256x128xf32, #tpu.memory_space<vmem>>) attributes {dimension_semantics = [#tpu.dimension_semantics<parallel>], iteration_bounds = array<i64: 2>, scalar_prefetch = 0 : i64, scratch_operands = 0 : i64, tpu.core_type = #tpu.core_type<tc>, window_params = [{transform_indices = @transform_0, window_bounds = array<i64: 256, 32>}, {transform_indices = @transform_1, window_bounds = array<i64: 256, 16>}, {pipeline_mode = #tpu.pipeline_mode<synchronous>, transform_indices = @transform_2, window_bounds = array<i64: 32, 256>}, {pipeline_mode = #tpu.pipeline_mode<synchronous>, transform_indices = @transform_3, window_bounds = array<i64: 1, 256>}, {pipeline_mode = #tpu.pipeline_mode<synchronous>, transform_indices = @transform_4, window_bounds = array<i64: 256, 128>}, {pipeline_mode = #tpu.pipeline_mode<synchronous>, transform_indices = @transform_5, window_bounds = array<i64: 1, 128>}, {pipeline_mode = #tpu.pipeline_mode<synchronous>, transform_indices = @transform_6, window_bounds = array<i64: 16, 256>}, {pipeline_mode = #tpu.pipeline_mode<synchronous>, transform_indices = @transform_7, window_bounds = array<i64: 1, 256>}, {pipeline_mode = #tpu.pipeline_mode<synchronous>, transform_indices = @transform_8, window_bounds = array<i64: 256, 128>}, {pipeline_mode = #tpu.pipeline_mode<synchronous>, transform_indices = @transform_9, window_bounds = array<i64: 1, 128>}, {transform_indices = @transform_10, window_bounds = array<i64: 256, 128>}, {transform_indices = @transform_11, window_bounds = array<i64: 256, 128>}]} {
    %c0 = arith.constant 0 : index
    %c0_0 = arith.constant 0 : index
    %0 = vector.load %arg1[%c0, %c0_0] : memref<256x32xbf16, #tpu.memory_space<vmem>>, vector<256x32xbf16>
    %c0_1 = arith.constant 0 : index
    %c0_2 = arith.constant 0 : index
    %1 = vector.load %arg2[%c0_1, %c0_2] : memref<256x16xf32, #tpu.memory_space<vmem>>, vector<256x16xf32>
    %c0_3 = arith.constant 0 : index
    %c0_4 = arith.constant 0 : index
    %2 = vector.load %arg3[%c0_3, %c0_4] : memref<32x256xbf16, #tpu.memory_space<vmem>>, vector<32x256xbf16>
    %cst = arith.constant dense<0.000000e+00> : vector<256x256xf32>
    %3 = tpu.matmul %0, %2, %cst {dimension_numbers = #tpu.dot_dimension_numbers<[1], [0], [0], [1], [0, 0, 1, 1], [], []>} : vector<256x32xbf16>, vector<32x256xbf16>, vector<256x256xf32> -> vector<256x256xf32>
    %c0_5 = arith.constant 0 : index
    %c0_6 = arith.constant 0 : index
    %4 = vector.load %arg4[%c0_5, %c0_6] : memref<1x256xf32, #tpu.memory_space<vmem>>, vector<1x256xf32>
    %5 = vector.broadcast %4 : vector<1x256xf32> to vector<256x256xf32>
    %6 = arith.addf %3, %5 : vector<256x256xf32>
    %cst_7 = arith.constant 0.000000e+00 : f32
    %7 = vector.broadcast %cst_7 : f32 to vector<256x256xf32>
    %8 = arith.maximumf %6, %7 : vector<256x256xf32>
    %9 = arith.truncf %8 : vector<256x256xf32> to vector<256x256xbf16>
    %c0_8 = arith.constant 0 : index
    %c0_9 = arith.constant 0 : index
    %10 = vector.load %arg5[%c0_8, %c0_9] : memref<256x128xbf16, #tpu.memory_space<vmem>>, vector<256x128xbf16>
    %cst_10 = arith.constant dense<0.000000e+00> : vector<256x128xf32>
    %11 = tpu.matmul %9, %10, %cst_10 {dimension_numbers = #tpu.dot_dimension_numbers<[1], [0], [0], [1], [0, 0, 1, 1], [], []>} : vector<256x256xbf16>, vector<256x128xbf16>, vector<256x128xf32> -> vector<256x128xf32>
    %c0_11 = arith.constant 0 : index
    %c0_12 = arith.constant 0 : index
    %12 = vector.load %arg6[%c0_11, %c0_12] : memref<1x128xf32, #tpu.memory_space<vmem>>, vector<1x128xf32>
    %13 = vector.broadcast %12 : vector<1x128xf32> to vector<256x128xf32>
    %14 = arith.addf %11, %13 : vector<256x128xf32>
    %15 = vector.extract_strided_slice %14 {offsets = [0, 0], sizes = [256, 16], strides = [1, 1]} : vector<256x128xf32> to vector<256x16xf32>
    %16 = vector.extract_strided_slice %14 {offsets = [0, 16], sizes = [256, 16], strides = [1, 1]} : vector<256x128xf32> to vector<256x16xf32>
    %cst_13 = arith.constant 5.000000e-01 : f32
    %17 = vector.broadcast %cst_13 : f32 to vector<256x16xf32>
    %18 = arith.mulf %17, %16 : vector<256x16xf32>
    %19 = math.exp %18 : vector<256x16xf32>
    %20 = arith.mulf %1, %19 : vector<256x16xf32>
    %21 = arith.addf %15, %20 : vector<256x16xf32>
    %22 = arith.truncf %21 : vector<256x16xf32> to vector<256x16xbf16>
    %c0_14 = arith.constant 0 : index
    %c0_15 = arith.constant 0 : index
    %23 = vector.load %arg7[%c0_14, %c0_15] : memref<16x256xbf16, #tpu.memory_space<vmem>>, vector<16x256xbf16>
    %cst_16 = arith.constant dense<0.000000e+00> : vector<256x256xf32>
    %24 = tpu.matmul %22, %23, %cst_16 {dimension_numbers = #tpu.dot_dimension_numbers<[1], [0], [0], [1], [0, 0, 1, 1], [], []>} : vector<256x16xbf16>, vector<16x256xbf16>, vector<256x256xf32> -> vector<256x256xf32>
    %c0_17 = arith.constant 0 : index
    %c0_18 = arith.constant 0 : index
    %25 = vector.load %arg8[%c0_17, %c0_18] : memref<1x256xf32, #tpu.memory_space<vmem>>, vector<1x256xf32>
    %26 = vector.broadcast %25 : vector<1x256xf32> to vector<256x256xf32>
    %27 = arith.addf %24, %26 : vector<256x256xf32>
    %cst_19 = arith.constant 0.000000e+00 : f32
    %28 = vector.broadcast %cst_19 : f32 to vector<256x256xf32>
    %29 = arith.maximumf %27, %28 : vector<256x256xf32>
    %30 = arith.truncf %29 : vector<256x256xf32> to vector<256x256xbf16>
    %c0_20 = arith.constant 0 : index
    %c0_21 = arith.constant 0 : index
    %31 = vector.load %arg9[%c0_20, %c0_21] : memref<256x128xbf16, #tpu.memory_space<vmem>>, vector<256x128xbf16>
    %cst_22 = arith.constant dense<0.000000e+00> : vector<256x128xf32>
    %32 = tpu.matmul %30, %31, %cst_22 {dimension_numbers = #tpu.dot_dimension_numbers<[1], [0], [0], [1], [0, 0, 1, 1], [], []>} : vector<256x256xbf16>, vector<256x128xbf16>, vector<256x128xf32> -> vector<256x128xf32>
    %c0_23 = arith.constant 0 : index
    %c0_24 = arith.constant 0 : index
    %33 = vector.load %arg10[%c0_23, %c0_24] : memref<1x128xf32, #tpu.memory_space<vmem>>, vector<1x128xf32>
    %34 = vector.broadcast %33 : vector<1x128xf32> to vector<256x128xf32>
    %35 = arith.addf %32, %34 : vector<256x128xf32>
    %c0_25 = arith.constant 0 : index
    %c0_26 = arith.constant 0 : index
    %36 = vector.load %arg11[%c0_25, %c0_26] : memref<256x128xf32, #tpu.memory_space<vmem>>, vector<256x128xf32>
    tpu.vector_store %arg11[%c0_25, %c0_26], %35 {strides = array<i32>} : memref<256x128xf32, #tpu.memory_space<vmem>>, vector<256x128xf32>,
    %c0_27 = arith.constant 0 : index
    %c0_28 = arith.constant 0 : index
    %37 = vector.load %arg12[%c0_27, %c0_28] : memref<256x128xf32, #tpu.memory_space<vmem>>, vector<256x128xf32>
    tpu.vector_store %arg12[%c0_27, %c0_28], %14 {strides = array<i32>} : memref<256x128xf32, #tpu.memory_space<vmem>>, vector<256x128xf32>,
    return
  }
  func.func @transform_0(%arg0: i32) -> (i32, i32) {
    %c0_i32 = arith.constant 0 : i32
    %c0_i32_0 = arith.constant 0 : i32
    return %arg0, %c0_i32 : i32, i32
  }
  func.func @transform_1(%arg0: i32) -> (i32, i32) {
    %c0_i32 = arith.constant 0 : i32
    %c0_i32_0 = arith.constant 0 : i32
    return %arg0, %c0_i32 : i32, i32
  }
  func.func @transform_2(%arg0: i32) -> (i32, i32) {
    %c0_i32 = arith.constant 0 : i32
    %c0_i32_0 = arith.constant 0 : i32
    %c0_i32_1 = arith.constant 0 : i32
    return %c0_i32, %c0_i32_0 : i32, i32
  }
  func.func @transform_3(%arg0: i32) -> (i32, i32) {
    %c0_i32 = arith.constant 0 : i32
    %c0_i32_0 = arith.constant 0 : i32
    %c0_i32_1 = arith.constant 0 : i32
    return %c0_i32, %c0_i32_0 : i32, i32
  }
  func.func @transform_4(%arg0: i32) -> (i32, i32) {
    %c0_i32 = arith.constant 0 : i32
    %c0_i32_0 = arith.constant 0 : i32
    %c0_i32_1 = arith.constant 0 : i32
    return %c0_i32, %c0_i32_0 : i32, i32
  }
  func.func @transform_5(%arg0: i32) -> (i32, i32) {
    %c0_i32 = arith.constant 0 : i32
    %c0_i32_0 = arith.constant 0 : i32
    %c0_i32_1 = arith.constant 0 : i32
    return %c0_i32, %c0_i32_0 : i32, i32
  }
  func.func @transform_6(%arg0: i32) -> (i32, i32) {
    %c0_i32 = arith.constant 0 : i32
    %c0_i32_0 = arith.constant 0 : i32
    %c0_i32_1 = arith.constant 0 : i32
    return %c0_i32, %c0_i32_0 : i32, i32
  }
  func.func @transform_7(%arg0: i32) -> (i32, i32) {
    %c0_i32 = arith.constant 0 : i32
    %c0_i32_0 = arith.constant 0 : i32
    %c0_i32_1 = arith.constant 0 : i32
    return %c0_i32, %c0_i32_0 : i32, i32
  }
  func.func @transform_8(%arg0: i32) -> (i32, i32) {
    %c0_i32 = arith.constant 0 : i32
    %c0_i32_0 = arith.constant 0 : i32
    %c0_i32_1 = arith.constant 0 : i32
    return %c0_i32, %c0_i32_0 : i32, i32
  }
  func.func @transform_9(%arg0: i32) -> (i32, i32) {
    %c0_i32 = arith.constant 0 : i32
    %c0_i32_0 = arith.constant 0 : i32
    %c0_i32_1 = arith.constant 0 : i32
    return %c0_i32, %c0_i32_0 : i32, i32
  }
  func.func @transform_10(%arg0: i32) -> (i32, i32) {
    %c0_i32 = arith.constant 0 : i32
    %c0_i32_0 = arith.constant 0 : i32
    return %arg0, %c0_i32 : i32, i32
  }
  func.func @transform_11(%arg0: i32) -> (i32, i32) {
    %c0_i32 = arith.constant 0 : i32
    %c0_i32_0 = arith.constant 0 : i32
    return %arg0, %c0_i32 : i32, i32
  }
}

</mosaic_0001>

<llo_original>
// kernel: tpu_custom_call.1
$region0: #{tpu_custom_call.1}
  #allocation0 [shape = 'u32[]', space=smem, size = 0x4, offset = 0x4, fixed_abs, tag = 'smem constant byte address 0x4 - core index']
  #allocation1 [shape = 'u32[144,128]{1,0:T(1,128)}', space=vmem, size = 0x12000, scoped, tag = 'internal scratch']
  %s0 = inlined_call_operand.vmem [shape: bf16[512,32], index: 0, kind: input, shape index: {}]
  %s1 = inlined_call_operand.vmem [shape: f32[512,16], index: 1, kind: input, shape index: {}]
  %s2 = inlined_call_operand.vmem [shape: bf16[32,256], index: 2, kind: input, shape index: {}]
  %s3 = inlined_call_operand.vmem [shape: f32[1,256], index: 3, kind: input, shape index: {}]
  %s4 = inlined_call_operand.vmem [shape: bf16[256,128], index: 4, kind: input, shape index: {}]
  %s5 = inlined_call_operand.vmem [shape: f32[1,128], index: 5, kind: input, shape index: {}]
  %s6 = inlined_call_operand.vmem [shape: bf16[16,256], index: 6, kind: input, shape index: {}]
  %s7 = inlined_call_operand.vmem [shape: f32[1,256], index: 7, kind: input, shape index: {}]
  %s8 = inlined_call_operand.vmem [shape: bf16[256,128], index: 8, kind: input, shape index: {}]
  %s9 = inlined_call_operand.vmem [shape: f32[1,128], index: 9, kind: input, shape index: {}]
  %s10 = inlined_call_operand.hbm [shape: f32[512,128], index: 10, kind: output, shape index: {0}]
  %s11 = inlined_call_operand.hbm [shape: f32[512,128], index: 11, kind: output, shape index: {1}]
  %12 = xla_tuple %s10, %s11
  %s13 = sld [smem:[#allocation0]]
  $region81: #{tpu_custom_call.1} parent=0
    _
  %s15 = ssub.s32 1, %s13
  %s16 = scalar_select 0, %s15, %s13
  $region1: #{tpu_custom_call.1} parent=0
    #allocation2 [shape = 'u8[262144]{0}', space=vmem, size = 0x40000, scoped, tag = 'output window, operand 0']
    #allocation3 [shape = 's32[2]{0}', space=sflag, size = 0x8, scoped, tag = 'scoped memory for tpu_custom_call.1']
    #allocation4 [shape = 'u8[262144]{0}', space=vmem, size = 0x40000, scoped, tag = 'output window, operand 1']
    #allocation5 [shape = 's32[2]{0}', space=sflag, size = 0x8, scoped, tag = 'scoped memory for tpu_custom_call.1']
    %17 = vsyncpa [#allocation3], 0
    %s18 = scalar_lea.sflag [#allocation3], 1
    %19 = vsyncpa %s18, 0
    %20 = vsyncpa [#allocation5], 0
    %s21 = scalar_lea.sflag [#allocation5], 1
    %22 = vsyncpa %s21, 0
    loop: start=0, step=1, limit=4
    $region2: #{tpu_custom_call.1} parent=1 // loop_pre_header
      _
    $region3: #{tpu_custom_call.1} parent=1 // loop_header
      %s24 = sphi 0, %s28
      %p25 = scmp.ge.s32.totalorder %s24, 4
      %s34 = sphi 0, %s36
      %s37 = sphi 0, %s34
      %s38 = sphi 0, %s37
      %s54 = sphi 0, %s38
      %s60 = sphi 0, %s62
      %s63 = sphi 0, %s60
      %s64 = sphi 0, %s63
      %s80 = sphi 0, %s64
      %s84 = sphi 0, %s84
      %s86 = sphi 0, %s84
      %s87 = sphi 0, %s86
      %s101 = sphi 0, %s87
      %s105 = sphi 0, %s105
      %s107 = sphi 0, %s105
      %s108 = sphi 0, %s107
      %s122 = sphi 0, %s108
      %s126 = sphi 0, %s126
      %s128 = sphi 0, %s126
      %s129 = sphi 0, %s128
      %s143 = sphi 0, %s129
      %s147 = sphi 0, %s147
      %s149 = sphi 0, %s147
      %s150 = sphi 0, %s149
      %s164 = sphi 0, %s150
      %s168 = sphi 0, %s168
      %s170 = sphi 0, %s168
      %s171 = sphi 0, %s170
      %s185 = sphi 0, %s171
      %s189 = sphi 0, %s189
      %s191 = sphi 0, %s189
      %s192 = sphi 0, %s191
      %s206 = sphi 0, %s192
      %s210 = sphi 0, %s210
      %s212 = sphi 0, %s210
      %s213 = sphi 0, %s212
      %s227 = sphi 0, %s213
      %s231 = sphi 0, %s231
      %s233 = sphi 0, %s231
      %s234 = sphi 0, %s233
      %s248 = sphi 0, %s234
      %s254 = sphi 0, %s256
      %s257 = sphi 0, %s254
      %s258 = sphi 0, %s257
      %s274 = sphi 0, %s258
      %s280 = sphi 0, %s282
      %s283 = sphi 0, %s280
      %s284 = sphi 0, %s283
      %s300 = sphi 0, %s284
    $region4: #{tpu_custom_call.1} parent=1 // loop_header_branch
      %27 = sbr.rel (%p25) target = $region8
    $region5: #{tpu_custom_call.1} parent=1 // loop_body
      %s29 = ssub.s32 %s24, 1
      %s30 = ssub.s32 %s24, 2
      %s31 = sadd.s32 %s24, 1
      %s32 = ssub.s32 %s24, %s31
      %p33 = scmp.eq.s32.totalorder %s32, 0
      %s35 = sadd.s32 %s34, 1
      %s36 = scalar_select %p33, %s34, %s35
      %p39 = pneg %p33
      %p40 = scmp.eq.s32.totalorder %s24, 1
      %p41 = por %p39, %p40
      %p42 = scmp.ne.s32.totalorder %s34, %s37
      %p43 = scmp.eq.s32.totalorder %s24, 0
      %p44 = por %p42, %p43
      %p45 = scmp.ne.s32.totalorder %s34, %s37
      %p46 = scmp.eq.s32.totalorder %s29, 1
      %p47 = por %p45, %p46
      %p48 = scmp.ne.s32.totalorder %s37, %s38
      %p49 = scmp.eq.s32.totalorder %s29, 0
      %p50 = por %p48, %p49
      %p51 = scmp.ne.s32.totalorder %s37, %s38
      %p52 = scmp.eq.s32.totalorder %s30, 1
      %p53 = por %p51, %p52
      %p55 = scmp.ne.s32.totalorder %s38, %s54
      %p56 = scmp.eq.s32.totalorder %s30, 0
      %p57 = por %p55, %p56
      %s58 = ssub.s32 %s24, %s31
      %p59 = scmp.eq.s32.totalorder %s58, 0
      %s61 = sadd.s32 %s60, 1
      %s62 = scalar_select %p59, %s60, %s61
      %p65 = pneg %p59
      %p66 = scmp.eq.s32.totalorder %s24, 1
      %p67 = por %p65, %p66
      %p68 = scmp.ne.s32.totalorder %s60, %s63
      %p69 = scmp.eq.s32.totalorder %s24, 0
      %p70 = por %p68, %p69
      %p71 = scmp.ne.s32.totalorder %s60, %s63
      %p72 = scmp.eq.s32.totalorder %s29, 1
      %p73 = por %p71, %p72
      %p74 = scmp.ne.s32.totalorder %s63, %s64
      %p75 = scmp.eq.s32.totalorder %s29, 0
      %p76 = por %p74, %p75
      %p77 = scmp.ne.s32.totalorder %s63, %s64
      %p78 = scmp.eq.s32.totalorder %s30, 1
      %p79 = por %p77, %p78
      %p81 = scmp.ne.s32.totalorder %s64, %s80
      %p82 = scmp.eq.s32.totalorder %s30, 0
      %p83 = por %p81, %p82
      %s85 = sadd.s32 %s84, 1
      %p88 = scmp.eq.s32.totalorder %s24, 1
      %p89 = scmp.ne.s32.totalorder %s84, %s86
      %p90 = scmp.eq.s32.totalorder %s24, 0
      %p91 = por %p89, %p90
      %p92 = scmp.ne.s32.totalorder %s84, %s86
      %p93 = scmp.eq.s32.totalorder %s29, 1
      %p94 = por %p92, %p93
      %p95 = scmp.ne.s32.totalorder %s86, %s87
      %p96 = scmp.eq.s32.totalorder %s29, 0
      %p97 = por %p95, %p96
      %p98 = scmp.ne.s32.totalorder %s86, %s87
      %p99 = scmp.eq.s32.totalorder %s30, 1
      %p100 = por %p98, %p99
      %p102 = scmp.ne.s32.totalorder %s87, %s101
      %p103 = scmp.eq.s32.totalorder %s30, 0
      %p104 = por %p102, %p103
      %s106 = sadd.s32 %s105, 1
      %p109 = scmp.eq.s32.totalorder %s24, 1
      %p110 = scmp.ne.s32.totalorder %s105, %s107
      %p111 = scmp.eq.s32.totalorder %s24, 0
      %p112 = por %p110, %p111
      %p113 = scmp.ne.s32.totalorder %s105, %s107
      %p114 = scmp.eq.s32.totalorder %s29, 1
      %p115 = por %p113, %p114
      %p116 = scmp.ne.s32.totalorder %s107, %s108
      %p117 = scmp.eq.s32.totalorder %s29, 0
      %p118 = por %p116, %p117
      %p119 = scmp.ne.s32.totalorder %s107, %s108
      %p120 = scmp.eq.s32.totalorder %s30, 1
      %p121 = por %p119, %p120
      %p123 = scmp.ne.s32.totalorder %s108, %s122
      %p124 = scmp.eq.s32.totalorder %s30, 0
      %p125 = por %p123, %p124
      %s127 = sadd.s32 %s126, 1
      %p130 = scmp.eq.s32.totalorder %s24, 1
      %p131 = scmp.ne.s32.totalorder %s126, %s128
      %p132 = scmp.eq.s32.totalorder %s24, 0
      %p133 = por %p131, %p132
      %p134 = scmp.ne.s32.totalorder %s126, %s128
      %p135 = scmp.eq.s32.totalorder %s29, 1
      %p136 = por %p134, %p135
      %p137 = scmp.ne.s32.totalorder %s128, %s129
      %p138 = scmp.eq.s32.totalorder %s29, 0
      %p139 = por %p137, %p138
      %p140 = scmp.ne.s32.totalorder %s128, %s129
      %p141 = scmp.eq.s32.totalorder %s30, 1
      %p142 = por %p140, %p141
      %p144 = scmp.ne.s32.totalorder %s129, %s143
      %p145 = scmp.eq.s32.totalorder %s30, 0
      %p146 = por %p144, %p145
      %s148 = sadd.s32 %s147, 1
      %p151 = scmp.eq.s32.totalorder %s24, 1
      %p152 = scmp.ne.s32.totalorder %s147, %s149
      %p153 = scmp.eq.s32.totalorder %s24, 0
      %p154 = por %p152, %p153
      %p155 = scmp.ne.s32.totalorder %s147, %s149
      %p156 = scmp.eq.s32.totalorder %s29, 1
      %p157 = por %p155, %p156
      %p158 = scmp.ne.s32.totalorder %s149, %s150
      %p159 = scmp.eq.s32.totalorder %s29, 0
      %p160 = por %p158, %p159
      %p161 = scmp.ne.s32.totalorder %s149, %s150
      %p162 = scmp.eq.s32.totalorder %s30, 1
      %p163 = por %p161, %p162
      %p165 = scmp.ne.s32.totalorder %s150, %s164
      %p166 = scmp.eq.s32.totalorder %s30, 0
      %p167 = por %p165, %p166
      %s169 = sadd.s32 %s168, 1
      %p172 = scmp.eq.s32.totalorder %s24, 1
      %p173 = scmp.ne.s32.totalorder %s168, %s170
      %p174 = scmp.eq.s32.totalorder %s24, 0
      %p175 = por %p173, %p174
      %p176 = scmp.ne.s32.totalorder %s168, %s170
      %p177 = scmp.eq.s32.totalorder %s29, 1
      %p178 = por %p176, %p177
      %p179 = scmp.ne.s32.totalorder %s170, %s171
      %p180 = scmp.eq.s32.totalorder %s29, 0
      %p181 = por %p179, %p180
      %p182 = scmp.ne.s32.totalorder %s170, %s171
      %p183 = scmp.eq.s32.totalorder %s30, 1
      %p184 = por %p182, %p183
      %p186 = scmp.ne.s32.totalorder %s171, %s185
      %p187 = scmp.eq.s32.totalorder %s30, 0
      %p188 = por %p186, %p187
      %s190 = sadd.s32 %s189, 1
      %p193 = scmp.eq.s32.totalorder %s24, 1
      %p194 = scmp.ne.s32.totalorder %s189, %s191
      %p195 = scmp.eq.s32.totalorder %s24, 0
      %p196 = por %p194, %p195
      %p197 = scmp.ne.s32.totalorder %s189, %s191
      %p198 = scmp.eq.s32.totalorder %s29, 1
      %p199 = por %p197, %p198
      %p200 = scmp.ne.s32.totalorder %s191, %s192
      %p201 = scmp.eq.s32.totalorder %s29, 0
      %p202 = por %p200, %p201
      %p203 = scmp.ne.s32.totalorder %s191, %s192
      %p204 = scmp.eq.s32.totalorder %s30, 1
      %p205 = por %p203, %p204
      %p207 = scmp.ne.s32.totalorder %s192, %s206
      %p208 = scmp.eq.s32.totalorder %s30, 0
      %p209 = por %p207, %p208
      %s211 = sadd.s32 %s210, 1
      %p214 = scmp.eq.s32.totalorder %s24, 1
      %p215 = scmp.ne.s32.totalorder %s210, %s212
      %p216 = scmp.eq.s32.totalorder %s24, 0
      %p217 = por %p215, %p216
      %p218 = scmp.ne.s32.totalorder %s210, %s212
      %p219 = scmp.eq.s32.totalorder %s29, 1
      %p220 = por %p218, %p219
      %p221 = scmp.ne.s32.totalorder %s212, %s213
      %p222 = scmp.eq.s32.totalorder %s29, 0
      %p223 = por %p221, %p222
      %p224 = scmp.ne.s32.totalorder %s212, %s213
      %p225 = scmp.eq.s32.totalorder %s30, 1
      %p226 = por %p224, %p225
      %p228 = scmp.ne.s32.totalorder %s213, %s227
      %p229 = scmp.eq.s32.totalorder %s30, 0
      %p230 = por %p228, %p229
      %s232 = sadd.s32 %s231, 1
      %p235 = scmp.eq.s32.totalorder %s24, 1
      %p236 = scmp.ne.s32.totalorder %s231, %s233
      %p237 = scmp.eq.s32.totalorder %s24, 0
      %p238 = por %p236, %p237
      %p239 = scmp.ne.s32.totalorder %s231, %s233
      %p240 = scmp.eq.s32.totalorder %s29, 1
      %p241 = por %p239, %p240
      %p242 = scmp.ne.s32.totalorder %s233, %s234
      %p243 = scmp.eq.s32.totalorder %s29, 0
      %p244 = por %p242, %p243
      %p245 = scmp.ne.s32.totalorder %s233, %s234
      %p246 = scmp.eq.s32.totalorder %s30, 1
      %p247 = por %p245, %p246
      %p249 = scmp.ne.s32.totalorder %s234, %s248
      %p250 = scmp.eq.s32.totalorder %s30, 0
      %p251 = por %p249, %p250
      %s252 = ssub.s32 %s24, %s31
      %p253 = scmp.eq.s32.totalorder %s252, 0
      %s255 = sadd.s32 %s254, 1
      %s256 = scalar_select %p253, %s254, %s255
      %p259 = pneg %p253
      %p260 = scmp.eq.s32.totalorder %s24, 1
      %p261 = por %p259, %p260
      %p262 = scmp.ne.s32.totalorder %s254, %s257
      %p263 = scmp.eq.s32.totalorder %s24, 0
      %p264 = por %p262, %p263
      %p265 = scmp.ne.s32.totalorder %s254, %s257
      %p266 = scmp.eq.s32.totalorder %s29, 1
      %p267 = por %p265, %p266
      %p268 = scmp.ne.s32.totalorder %s257, %s258
      %p269 = scmp.eq.s32.totalorder %s29, 0
      %p270 = por %p268, %p269
      %p271 = scmp.ne.s32.totalorder %s257, %s258
      %p272 = scmp.eq.s32.totalorder %s30, 1
      %p273 = por %p271, %p272
      %p275 = scmp.ne.s32.totalorder %s258, %s274
      %p276 = scmp.eq.s32.totalorder %s30, 0
      %p277 = por %p275, %p276
      %s278 = ssub.s32 %s24, %s31
      %p279 = scmp.eq.s32.totalorder %s278, 0
      %s281 = sadd.s32 %s280, 1
      %s282 = scalar_select %p279, %s280, %s281
      %p285 = pneg %p279
      %p286 = scmp.eq.s32.totalorder %s24, 1
      %p287 = por %p285, %p286
      %p288 = scmp.ne.s32.totalorder %s280, %s283
      %p289 = scmp.eq.s32.totalorder %s24, 0
      %p290 = por %p288, %p289
      %p291 = scmp.ne.s32.totalorder %s280, %s283
      %p292 = scmp.eq.s32.totalorder %s29, 1
      %p293 = por %p291, %p292
      %p294 = scmp.ne.s32.totalorder %s283, %s284
      %p295 = scmp.eq.s32.totalorder %s29, 0
      %p296 = por %p294, %p295
      %p297 = scmp.ne.s32.totalorder %s283, %s284
      %p298 = scmp.eq.s32.totalorder %s30, 1
      %p299 = por %p297, %p298
      %p301 = scmp.ne.s32.totalorder %s284, %s300
      %p302 = scmp.eq.s32.totalorder %s30, 0
      %p303 = por %p301, %p302
      %p304 = scmp.le.s32.totalorder 1, %s24
      %p305 = scmp.lt.s32.totalorder %s24, 3
      %p306 = pnand %p304, %p305
      %p307 = pneg %p306
      // Predicated region
      $region9: #{tpu_custom_call.1} parent=5 // pred_check
        _
      $region10: #{tpu_custom_call.1} parent=5 // pred_check_branch
        %309 = sbr.rel (%p306) target = $region12
      $region11: #{tpu_custom_call.1} parent=5 // pred_region
        %s310 = ssub.s32 %s24, 1
        // Predicated region
        $region13: #{tpu_custom_call.1} parent=11 // pred_check
          %p311 = pneg %p97
        $region14: #{tpu_custom_call.1} parent=11 // pred_check_branch
          %313 = sbr.rel (%p311) target = $region16
        $region15: #{tpu_custom_call.1} parent=11 // pred_region
          _
        $region16: #{tpu_custom_call.1} parent=11 // pred_fallthru
          _
        // Predicated region
        $region17: #{tpu_custom_call.1} parent=11 // pred_check
          %p314 = pneg %p118
        $region18: #{tpu_custom_call.1} parent=11 // pred_check_branch
          %316 = sbr.rel (%p314) target = $region20
        $region19: #{tpu_custom_call.1} parent=11 // pred_region
          _
        $region20: #{tpu_custom_call.1} parent=11 // pred_fallthru
          _
        // Predicated region
        $region21: #{tpu_custom_call.1} parent=11 // pred_check
          %p317 = pneg %p139
        $region22: #{tpu_custom_call.1} parent=11 // pred_check_branch
          %319 = sbr.rel (%p317) target = $region24
        $region23: #{tpu_custom_call.1} parent=11 // pred_region
          _
        $region24: #{tpu_custom_call.1} parent=11 // pred_fallthru
          _
        // Predicated region
        $region25: #{tpu_custom_call.1} parent=11 // pred_check
          %p320 = pneg %p160
        $region26: #{tpu_custom_call.1} parent=11 // pred_check_branch
          %322 = sbr.rel (%p320) target = $region28
        $region27: #{tpu_custom_call.1} parent=11 // pred_region
          _
        $region28: #{tpu_custom_call.1} parent=11 // pred_fallthru
          _
        // Predicated region
        $region29: #{tpu_custom_call.1} parent=11 // pred_check
          %p323 = pneg %p181
        $region30: #{tpu_custom_call.1} parent=11 // pred_check_branch
          %325 = sbr.rel (%p323) target = $region32
        $region31: #{tpu_custom_call.1} parent=11 // pred_region
          _
        $region32: #{tpu_custom_call.1} parent=11 // pred_fallthru
          _
        // Predicated region
        $region33: #{tpu_custom_call.1} parent=11 // pred_check
          %p326 = pneg %p202
        $region34: #{tpu_custom_call.1} parent=11 // pred_check_branch
          %328 = sbr.rel (%p326) target = $region36
        $region35: #{tpu_custom_call.1} parent=11 // pred_region
          _
        $region36: #{tpu_custom_call.1} parent=11 // pred_fallthru
          _
        // Predicated region
        $region37: #{tpu_custom_call.1} parent=11 // pred_check
          %p329 = pneg %p223
        $region38: #{tpu_custom_call.1} parent=11 // pred_check_branch
          %331 = sbr.rel (%p329) target = $region40
        $region39: #{tpu_custom_call.1} parent=11 // pred_region
          _
        $region40: #{tpu_custom_call.1} parent=11 // pred_fallthru
          _
        // Predicated region
        $region41: #{tpu_custom_call.1} parent=11 // pred_check
          %p332 = pneg %p244
        $region42: #{tpu_custom_call.1} parent=11 // pred_check_branch
          %334 = sbr.rel (%p332) target = $region44
        $region43: #{tpu_custom_call.1} parent=11 // pred_region
          _
        $region44: #{tpu_custom_call.1} parent=11 // pred_fallthru
          _
      $region12: #{tpu_custom_call.1} parent=5 // pred_fallthru
        _
      %p335 = scmp.lt.s32.totalorder %s24, 2
      // Predicated region
      $region45: #{tpu_custom_call.1} parent=5 // pred_check
        %p336 = pneg %p335
      $region46: #{tpu_custom_call.1} parent=5 // pred_check_branch
        %338 = sbr.rel (%p336) target = $region48
      $region47: #{tpu_custom_call.1} parent=5 // pred_region
        // Predicated region
        $region49: #{tpu_custom_call.1} parent=47 // pred_check
          %p339 = pneg %p44
        $region50: #{tpu_custom_call.1} parent=47 // pred_check_branch
          %341 = sbr.rel (%p339) target = $region52
        $region51: #{tpu_custom_call.1} parent=47 // pred_region
          %s342 = smul.u32 32, %s24
          %p343 = scmp.lt.s32.totalorder %s342, 63
          %s344 = scalar_select %p343, %s342, 63
          %s345 = smul.addr %s344, 4
          %s346 = scalar_lea.vmem %s0, %s345
          %s347 = smul.u32 32, %s24
        $region52: #{tpu_custom_call.1} parent=47 // pred_fallthru
          _
        // Predicated region
        $region53: #{tpu_custom_call.1} parent=47 // pred_check
          %p348 = pneg %p70
        $region54: #{tpu_custom_call.1} parent=47 // pred_check_branch
          %350 = sbr.rel (%p348) target = $region56
        $region55: #{tpu_custom_call.1} parent=47 // pred_region
          %s351 = smul.u32 32, %s24
          %p352 = scmp.lt.s32.totalorder %s351, 63
          %s353 = scalar_select %p352, %s351, 63
          %s354 = smul.addr %s353, 8
          %s355 = scalar_lea.vmem %s1, %s354
          %s356 = smul.u32 32, %s24
        $region56: #{tpu_custom_call.1} parent=47 // pred_fallthru
          _
      $region48: #{tpu_custom_call.1} parent=5 // pred_fallthru
        _
      %p357 = scmp.le.s32.totalorder 1, %s24
      %p358 = scmp.lt.s32.totalorder %s24, 3
      %p359 = pnand %p357, %p358
      %p360 = pneg %p359
      // Predicated region
      $region57: #{tpu_custom_call.1} parent=5 // pred_check
        _
      $region58: #{tpu_custom_call.1} parent=5 // pred_check_branch
        %362 = sbr.rel (%p359) target = $region60
      $region59: #{tpu_custom_call.1} parent=5 // pred_region
        %s363 = ssub.s32 %s24, 1
        %s364 = smul.u32 32, %s29
        %p365 = scmp.lt.s32.totalorder %s364, 63
        %s366 = scalar_select %p365, %s364, 63
        %s367 = smul.addr %s366, 4
        %s368 = scalar_lea.vmem %s0, %s367
        %p369 = pneg %p50
        %p370 = pneg %p47
        %s371 = smul.u32 32, %s29
        %p372 = scmp.lt.s32.totalorder %s371, 63
        %s373 = scalar_select %p372, %s371, 63
        %s374 = smul.addr %s373, 8
        %s375 = scalar_lea.vmem %s1, %s374
        %p376 = pneg %p76
        %p377 = pneg %p73
        %p378 = pneg %p97
        %p379 = pneg %p94
        %p380 = pneg %p118
        %p381 = pneg %p115
        %p382 = pneg %p139
        %p383 = pneg %p136
        %p384 = pneg %p160
        %p385 = pneg %p157
        %p386 = pneg %p181
        %p387 = pneg %p178
        %p388 = pneg %p202
        %p389 = pneg %p199
        %p390 = pneg %p223
        %p391 = pneg %p220
        %p392 = pneg %p244
        %p393 = pneg %p241
        %p394 = pneg %p270
        %p395 = pneg %p267
        %s396 = sand.u32 %s257, 1
        %s397 = scalar_lea.sflag [#allocation3], %s396
        %s398 = sand.u32 %s257, 1
        %s399 = smul.addr %s398, 256
        %s400 = scalar_lea.vmem [#allocation2], %s399
        %p401 = pneg %p296
        %p402 = pneg %p293
        %s403 = sand.u32 %s283, 1
        %s404 = scalar_lea.sflag [#allocation5], %s403
        %s405 = sand.u32 %s283, 1
        %s406 = smul.addr %s405, 256
        %s407 = scalar_lea.vmem [#allocation4], %s406
        %s408 = smul.u32 32, %s29
        %p409 = scmp.lt.s32.totalorder %s408, 63
        %s410 = scalar_select %p409, %s408, 63
        %s411 = smul.addr %s410, 4
        %s412 = scalar_lea.vmem %s0, %s411
        %s413 = smul.u32 32, %s29
        %s414 = smul.u32 32, %s29
        %p415 = scmp.lt.s32.totalorder %s414, 63
        %s416 = scalar_select %p415, %s414, 63
        %s417 = smul.addr %s416, 8
        %s418 = scalar_lea.vmem %s1, %s417
        %s419 = smul.u32 32, %s29
        %s420 = smul.u32 32, %s29
        %s421 = smul.u32 32, %s29
        %v423 = vld [vmem:[%s412] sm:$0xf]
        %v424 = vld [vmem:[%s412 + $0x4] sm:$0xf]
        %v425 = vld [vmem:[%s412 + $0x8] sm:$0xf]
        %v426 = vld [vmem:[%s412 + $0xc] sm:$0xf]
        %v427 = vld [vmem:[%s412 + $0x10] sm:$0xf]
        %v428 = vld [vmem:[%s412 + $0x14] sm:$0xf]
        %v429 = vld [vmem:[%s412 + $0x18] sm:$0xf]
        %v430 = vld [vmem:[%s412 + $0x1c] sm:$0xf]
        %v431 = vld [vmem:[%s412 + $0x20] sm:$0xf]
        %v432 = vld [vmem:[%s412 + $0x24] sm:$0xf]
        %v433 = vld [vmem:[%s412 + $0x28] sm:$0xf]
        %v434 = vld [vmem:[%s412 + $0x2c] sm:$0xf]
        %v435 = vld [vmem:[%s412 + $0x30] sm:$0xf]
        %v436 = vld [vmem:[%s412 + $0x34] sm:$0xf]
        %v437 = vld [vmem:[%s412 + $0x38] sm:$0xf]
        %v438 = vld [vmem:[%s412 + $0x3c] sm:$0xf]
        %v439 = vld [vmem:[%s412 + $0x40] sm:$0xf]
        %v440 = vld [vmem:[%s412 + $0x44] sm:$0xf]
        %v441 = vld [vmem:[%s412 + $0x48] sm:$0xf]
        %v442 = vld [vmem:[%s412 + $0x4c] sm:$0xf]
        %v443 = vld [vmem:[%s412 + $0x50] sm:$0xf]
        %v444 = vld [vmem:[%s412 + $0x54] sm:$0xf]
        %v445 = vld [vmem:[%s412 + $0x58] sm:$0xf]
        %v446 = vld [vmem:[%s412 + $0x5c] sm:$0xf]
        %v447 = vld [vmem:[%s412 + $0x60] sm:$0xf]
        %v448 = vld [vmem:[%s412 + $0x64] sm:$0xf]
        %v449 = vld [vmem:[%s412 + $0x68] sm:$0xf]
        %v450 = vld [vmem:[%s412 + $0x6c] sm:$0xf]
        %v451 = vld [vmem:[%s412 + $0x70] sm:$0xf]
        %v452 = vld [vmem:[%s412 + $0x74] sm:$0xf]
        %v453 = vld [vmem:[%s412 + $0x78] sm:$0xf]
        %v454 = vld [vmem:[%s412 + $0x7c] sm:$0xf]
        %v455 = vld [vmem:[%s418] sm:$0xff]
        %v456 = vld [vmem:[%s418 + $0x8] sm:$0xff]
        %v457 = vld [vmem:[%s418 + $0x10] sm:$0xff]
        %v458 = vld [vmem:[%s418 + $0x18] sm:$0xff]
        %v459 = vld [vmem:[%s418 + $0x20] sm:$0xff]
        %v460 = vld [vmem:[%s418 + $0x28] sm:$0xff]
        %v461 = vld [vmem:[%s418 + $0x30] sm:$0xff]
        %v462 = vld [vmem:[%s418 + $0x38] sm:$0xff]
        %v463 = vld [vmem:[%s418 + $0x40] sm:$0xff]
        %v464 = vld [vmem:[%s418 + $0x48] sm:$0xff]
        %v465 = vld [vmem:[%s418 + $0x50] sm:$0xff]
        %v466 = vld [vmem:[%s418 + $0x58] sm:$0xff]
        %v467 = vld [vmem:[%s418 + $0x60] sm:$0xff]
        %v468 = vld [vmem:[%s418 + $0x68] sm:$0xff]
        %v469 = vld [vmem:[%s418 + $0x70] sm:$0xff]
        %v470 = vld [vmem:[%s418 + $0x78] sm:$0xff]
        %v471 = vld [vmem:[%s418 + $0x80] sm:$0xff]
        %v472 = vld [vmem:[%s418 + $0x88] sm:$0xff]
        %v473 = vld [vmem:[%s418 + $0x90] sm:$0xff]
        %v474 = vld [vmem:[%s418 + $0x98] sm:$0xff]
        %v475 = vld [vmem:[%s418 + $0xa0] sm:$0xff]
        %v476 = vld [vmem:[%s418 + $0xa8] sm:$0xff]
        %v477 = vld [vmem:[%s418 + $0xb0] sm:$0xff]
        %v478 = vld [vmem:[%s418 + $0xb8] sm:$0xff]
        %v479 = vld [vmem:[%s418 + $0xc0] sm:$0xff]
        %v480 = vld [vmem:[%s418 + $0xc8] sm:$0xff]
        %v481 = vld [vmem:[%s418 + $0xd0] sm:$0xff]
        %v482 = vld [vmem:[%s418 + $0xd8] sm:$0xff]
        %v483 = vld [vmem:[%s418 + $0xe0] sm:$0xff]
        %v484 = vld [vmem:[%s418 + $0xe8] sm:$0xff]
        %v485 = vld [vmem:[%s418 + $0xf0] sm:$0xff]
        %v486 = vld [vmem:[%s418 + $0xf8] sm:$0xff]
        %v487 = vld [vmem:[%s2] sm:$0xff]
        %v488 = vld [vmem:[%s2 + $0x8] sm:$0xff]
        %v489 = vld [vmem:[%s2 + $0x10] sm:$0xff]
        %v490 = vld [vmem:[%s2 + $0x18] sm:$0xff]
        %v491 = vld [vmem:[%s3] sm:$0x3]
        %v493 = vlaneseq
        %v494 = vshrl.u32 %v493, 7
        %v495 = vsub.s32 0, %v494
        %v496 = vrot.slane %v491, %v495
        %v497 = vlaneseq
        %v498 = vshrl.u32 %v497, 7
        %v499 = vsub.s32 1, %v498
        %v500 = vrot.slane %v491, %v499
        %v535 = vunpack.c.l.b16 %v423
        %v536 = vunpack.c.l.b16 %v424
        %v537 = vunpack.c.l.b16 %v425
        %v538 = vunpack.c.l.b16 %v426
        %v539 = vunpack.c.l.b16 %v427
        %v540 = vunpack.c.l.b16 %v428
        %v541 = vunpack.c.l.b16 %v429
        %v542 = vunpack.c.l.b16 %v430
        %v543 = vunpack.c.l.b16 %v431
        %v544 = vunpack.c.l.b16 %v432
        %v545 = vunpack.c.l.b16 %v433
        %v546 = vunpack.c.l.b16 %v434
        %v547 = vunpack.c.l.b16 %v435
        %v548 = vunpack.c.l.b16 %v436
        %v549 = vunpack.c.l.b16 %v437
        %v550 = vunpack.c.l.b16 %v438
        %v551 = vunpack.c.l.b16 %v439
        %v552 = vunpack.c.l.b16 %v440
        %v553 = vunpack.c.l.b16 %v441
        %v554 = vunpack.c.l.b16 %v442
        %v555 = vunpack.c.l.b16 %v443
        %v556 = vunpack.c.l.b16 %v444
        %v557 = vunpack.c.l.b16 %v445
        %v558 = vunpack.c.l.b16 %v446
        %v559 = vunpack.c.l.b16 %v447
        %v560 = vunpack.c.l.b16 %v448
        %v561 = vunpack.c.l.b16 %v449
        %v562 = vunpack.c.l.b16 %v450
        %v563 = vunpack.c.l.b16 %v451
        %v564 = vunpack.c.l.b16 %v452
        %v565 = vunpack.c.l.b16 %v453
        %v566 = vunpack.c.l.b16 %v454
        %v567 = vpack.c.b16 %v536, %v535
        %v568 = vpack.c.b16 %v538, %v537
        %v569 = vpack.c.b16 %v540, %v539
        %v570 = vpack.c.b16 %v542, %v541
        %v571 = vpack.c.b16 %v544, %v543
        %v572 = vpack.c.b16 %v546, %v545
        %v573 = vpack.c.b16 %v548, %v547
        %v574 = vpack.c.b16 %v550, %v549
        %v575 = vpack.c.b16 %v552, %v551
        %v576 = vpack.c.b16 %v554, %v553
        %v577 = vpack.c.b16 %v556, %v555
        %v578 = vpack.c.b16 %v558, %v557
        %v579 = vpack.c.b16 %v560, %v559
        %v580 = vpack.c.b16 %v562, %v561
        %v581 = vpack.c.b16 %v564, %v563
        %v582 = vpack.c.b16 %v566, %v565
        %v587 = vunpack.c.l.b16 %v487
        %v588 = vunpack.c.h.b16 %v487
        %v589 = vunpack.c.l.b16 %v488
        %v590 = vunpack.c.h.b16 %v488
        %v591 = vunpack.c.l.b16 %v489
        %v592 = vunpack.c.h.b16 %v489
        %v593 = vunpack.c.l.b16 %v490
        %v594 = vunpack.c.h.b16 %v490
        %v595 = vpack.c.b16 %v589, %v587
        %v596 = vpack.c.b16 %v590, %v588
        %v597 = vpack.c.b16 %v593, %v591
        %v598 = vpack.c.b16 %v594, %v592
        %vm603 = vcmask 261120
        %v605 = vsel %vm603, %v567, 0
        %v608 = vsel %vm603, %v568, 0
        %v611 = vsel %vm603, %v569, 0
        %v614 = vsel %vm603, %v570, 0
        %v617 = vsel %vm603, %v571, 0
        %v620 = vsel %vm603, %v572, 0
        %v623 = vsel %vm603, %v573, 0
        %v626 = vsel %vm603, %v574, 0
        %v629 = vsel %vm603, %v575, 0
        %v632 = vsel %vm603, %v576, 0
        %v635 = vsel %vm603, %v577, 0
        %v638 = vsel %vm603, %v578, 0
        %v641 = vsel %vm603, %v579, 0
        %v644 = vsel %vm603, %v580, 0
        %v647 = vsel %vm603, %v581, 0
        %v650 = vsel %vm603, %v582, 0
        %652 = vmatprep.subr.bf16.mxu0 %v596
        %653 = vmatpush1.bf16.msra.mxu0 %v595
        %654 = vmatprep.subr.bf16.mxu0 %v598
        %655 = vmatpush1.bf16.msra.mxu0 %v597
        %656 = vmatprep.subr.bf16.mxu0 0
        %657 = vmatpush1.bf16.msra.mxu0 0
        %658 = vmatprep.subr.bf16.mxu0 0
        %659 = vmatpush1.bf16.msra.mxu0 0
        %660 = vmatprep.subr.bf16.mxu0 0
        %661 = vmatpush1.bf16.msra.mxu0 0
        %662 = vmatprep.subr.bf16.mxu0 0
        %663 = vmatpush1.bf16.msra.mxu0 0
        %664 = vmatprep.subr.bf16.mxu0 0
        %665 = vmatpush1.bf16.msra.mxu0 0
        %666 = vmatprep.subr.bf16.mxu0 0
        %667 = vmatpush1.bf16.msra.mxu0 0
        %668 = vmatprep.subr.bf16.mxu0 0
        %669 = vmatpush1.bf16.msra.mxu0 0
        %670 = vmatprep.subr.bf16.mxu0 0
        %671 = vmatpush1.bf16.msra.mxu0 0
        %672 = vmatprep.subr.bf16.mxu0 0
        %673 = vmatpush1.bf16.msra.mxu0 0
        %674 = vmatprep.subr.bf16.mxu0 0
        %675 = vmatpush1.bf16.msra.mxu0 0
        %676 = vmatprep.subr.bf16.mxu0 0
        %677 = vmatpush1.bf16.msra.mxu0 0
        %678 = vmatprep.subr.bf16.mxu0 0
        %679 = vmatpush1.bf16.msra.mxu0 0
        %680 = vmatprep.subr.bf16.mxu0 0
        %681 = vmatpush1.bf16.msra.mxu0 0
        %682 = vmatprep.subr.bf16.mxu0 0
        %683 = vmatpush1.bf16.msra.mxu0 0
        %684 = vmatprep.mubr.bf16.mxu0 0
        %685 = vmatmul.mubr.bf16.gmra.mrb[0].mxu0 %v605
        %v686 = vpop.f32.mrb[0].mxu0
        %v687 = vadd.f32 %v496, %v686
        %v688 = vpop.f32.mrb[0].mxu0
        %v689 = vadd.f32 %v500, %v688
        %v690 = vpop.f32.mrb[0].mxu0
        %v691 = vadd.f32 %v496, %v690
        %v692 = vpop.f32.mrb[0].mxu0
        %v693 = vadd.f32 %v500, %v692
        %694 = vmatprep.mubr.bf16.mxu0 0
        %695 = vmatmul.mubr.bf16.gmra.mrb[0].mxu0 %v608
        %v696 = vpop.f32.mrb[0].mxu0
        %v697 = vadd.f32 %v496, %v696
        %v698 = vpop.f32.mrb[0].mxu0
        %v699 = vadd.f32 %v500, %v698
        %v700 = vpop.f32.mrb[0].mxu0
        %v701 = vadd.f32 %v496, %v700
        %v702 = vpop.f32.mrb[0].mxu0
        %v703 = vadd.f32 %v500, %v702
        %704 = vmatprep.mubr.bf16.mxu0 0
        %705 = vmatmul.mubr.bf16.gmra.mrb[0].mxu0 %v611
        %v706 = vpop.f32.mrb[0].mxu0
        %v707 = vadd.f32 %v496, %v706
        %v708 = vpop.f32.mrb[0].mxu0
        %v709 = vadd.f32 %v500, %v708
        %v710 = vpop.f32.mrb[0].mxu0
        %v711 = vadd.f32 %v496, %v710
        %v712 = vpop.f32.mrb[0].mxu0
        %v713 = vadd.f32 %v500, %v712
        %714 = vmatprep.mubr.bf16.mxu0 0
        %715 = vmatmul.mubr.bf16.gmra.mrb[0].mxu0 %v614
        %v716 = vpop.f32.mrb[0].mxu0
        %v717 = vadd.f32 %v496, %v716
        %v718 = vpop.f32.mrb[0].mxu0
        %v719 = vadd.f32 %v500, %v718
        %v720 = vpop.f32.mrb[0].mxu0
        %v721 = vadd.f32 %v496, %v720
        %v722 = vpop.f32.mrb[0].mxu0
        %v723 = vadd.f32 %v500, %v722
        %724 = vmatprep.mubr.bf16.mxu0 0
        %725 = vmatmul.mubr.bf16.gmra.mrb[0].mxu0 %v617
        %v726 = vpop.f32.mrb[0].mxu0
        %v727 = vadd.f32 %v496, %v726
        %v728 = vpop.f32.mrb[0].mxu0
        %v729 = vadd.f32 %v500, %v728
        %v730 = vpop.f32.mrb[0].mxu0
        %v731 = vadd.f32 %v496, %v730
        %v732 = vpop.f32.mrb[0].mxu0
        %v733 = vadd.f32 %v500, %v732
        %734 = vmatprep.mubr.bf16.mxu0 0
        %735 = vmatmul.mubr.bf16.gmra.mrb[0].mxu0 %v620
        %v736 = vpop.f32.mrb[0].mxu0
        %v737 = vadd.f32 %v496, %v736
        %v738 = vpop.f32.mrb[0].mxu0
        %v739 = vadd.f32 %v500, %v738
        %v740 = vpop.f32.mrb[0].mxu0
        %v741 = vadd.f32 %v496, %v740
        %v742 = vpop.f32.mrb[0].mxu0
        %v743 = vadd.f32 %v500, %v742
        %744 = vmatprep.mubr.bf16.mxu0 0
        %745 = vmatmul.mubr.bf16.gmra.mrb[0].mxu0 %v623
        %v746 = vpop.f32.mrb[0].mxu0
        %v747 = vadd.f32 %v496, %v746
        %v748 = vpop.f32.mrb[0].mxu0
        %v749 = vadd.f32 %v500, %v748
        %v750 = vpop.f32.mrb[0].mxu0
        %v751 = vadd.f32 %v496, %v750
        %v752 = vpop.f32.mrb[0].mxu0
        %v753 = vadd.f32 %v500, %v752
        %754 = vmatprep.mubr.bf16.mxu0 0
        %755 = vmatmul.mubr.bf16.gmra.mrb[0].mxu0 %v626
        %v756 = vpop.f32.mrb[0].mxu0
        %v757 = vadd.f32 %v496, %v756
        %v758 = vpop.f32.mrb[0].mxu0
        %v759 = vadd.f32 %v500, %v758
        %v760 = vpop.f32.mrb[0].mxu0
        %v761 = vadd.f32 %v496, %v760
        %v762 = vpop.f32.mrb[0].mxu0
        %v763 = vadd.f32 %v500, %v762
        %764 = vmatprep.mubr.bf16.mxu0 0
        %765 = vmatmul.mubr.bf16.gmra.mrb[0].mxu0 %v629
        %v766 = vpop.f32.mrb[0].mxu0
        %v767 = vadd.f32 %v496, %v766
        %v768 = vpop.f32.mrb[0].mxu0
        %v769 = vadd.f32 %v500, %v768
        %v770 = vpop.f32.mrb[0].mxu0
        %v771 = vadd.f32 %v496, %v770
        %v772 = vpop.f32.mrb[0].mxu0
        %v773 = vadd.f32 %v500, %v772
        %774 = vmatprep.mubr.bf16.mxu0 0
        %775 = vmatmul.mubr.bf16.gmra.mrb[0].mxu0 %v632
        %v776 = vpop.f32.mrb[0].mxu0
        %v777 = vadd.f32 %v496, %v776
        %v778 = vpop.f32.mrb[0].mxu0
        %v779 = vadd.f32 %v500, %v778
        %v780 = vpop.f32.mrb[0].mxu0
        %v781 = vadd.f32 %v496, %v780
        %v782 = vpop.f32.mrb[0].mxu0
        %v783 = vadd.f32 %v500, %v782
        %784 = vmatprep.mubr.bf16.mxu0 0
        %785 = vmatmul.mubr.bf16.gmra.mrb[0].mxu0 %v635
        %v786 = vpop.f32.mrb[0].mxu0
        %v787 = vadd.f32 %v496, %v786
        %v788 = vpop.f32.mrb[0].mxu0
        %v789 = vadd.f32 %v500, %v788
        %v790 = vpop.f32.mrb[0].mxu0
        %v791 = vadd.f32 %v496, %v790
        %v792 = vpop.f32.mrb[0].mxu0
        %v793 = vadd.f32 %v500, %v792
        %794 = vmatprep.mubr.bf16.mxu0 0
        %795 = vmatmul.mubr.bf16.gmra.mrb[0].mxu0 %v638
        %v796 = vpop.f32.mrb[0].mxu0
        %v797 = vadd.f32 %v496, %v796
        %v798 = vpop.f32.mrb[0].mxu0
        %v799 = vadd.f32 %v500, %v798
        %v800 = vpop.f32.mrb[0].mxu0
        %v801 = vadd.f32 %v496, %v800
        %v802 = vpop.f32.mrb[0].mxu0
        %v803 = vadd.f32 %v500, %v802
        %804 = vmatprep.mubr.bf16.mxu0 0
        %805 = vmatmul.mubr.bf16.gmra.mrb[0].mxu0 %v641
        %v806 = vpop.f32.mrb[0].mxu0
        %v807 = vadd.f32 %v496, %v806
        %v808 = vpop.f32.mrb[0].mxu0
        %v809 = vadd.f32 %v500, %v808
        %v810 = vpop.f32.mrb[0].mxu0
        %v811 = vadd.f32 %v496, %v810
        %v812 = vpop.f32.mrb[0].mxu0
        %v813 = vadd.f32 %v500, %v812
        %814 = vmatprep.mubr.bf16.mxu0 0
        %815 = vmatmul.mubr.bf16.gmra.mrb[0].mxu0 %v644
        %v816 = vpop.f32.mrb[0].mxu0
        %v817 = vadd.f32 %v496, %v816
        %v818 = vpop.f32.mrb[0].mxu0
        %v819 = vadd.f32 %v500, %v818
        %v820 = vpop.f32.mrb[0].mxu0
        %v821 = vadd.f32 %v496, %v820
        %v822 = vpop.f32.mrb[0].mxu0
        %v823 = vadd.f32 %v500, %v822
        %824 = vmatprep.mubr.bf16.mxu0 0
        %825 = vmatmul.mubr.bf16.gmra.mrb[0].mxu0 %v647
        %v826 = vpop.f32.mrb[0].mxu0
        %v827 = vadd.f32 %v496, %v826
        %v828 = vpop.f32.mrb[0].mxu0
        %v829 = vadd.f32 %v500, %v828
        %v830 = vpop.f32.mrb[0].mxu0
        %v831 = vadd.f32 %v496, %v830
        %v832 = vpop.f32.mrb[0].mxu0
        %v833 = vadd.f32 %v500, %v832
        %834 = vmatprep.mubr.bf16.mxu0 0
        %835 = vmatmul.mubr.bf16.gmra.mrb[0].mxu0 %v650
        %v836 = vpop.f32.mrb[0].mxu0
        %v837 = vadd.f32 %v496, %v836
        %v838 = vpop.f32.mrb[0].mxu0
        %v839 = vadd.f32 %v500, %v838
        %v840 = vpop.f32.mrb[0].mxu0
        %v841 = vadd.f32 %v496, %v840
        %v842 = vpop.f32.mrb[0].mxu0
        %v843 = vadd.f32 %v500, %v842
        %844 = vdwg.mxu0
        %v845 = vmax.f32 %v687, 0.0
        %v846 = vmax.f32 %v689, 0.0
        %v847 = vmax.f32 %v691, 0.0
        %v848 = vmax.f32 %v693, 0.0
        %v849 = vmax.f32 %v697, 0.0
        %v850 = vmax.f32 %v699, 0.0
        %v851 = vmax.f32 %v701, 0.0
        %v852 = vmax.f32 %v703, 0.0
        %v853 = vmax.f32 %v707, 0.0
        %v854 = vmax.f32 %v709, 0.0
        %v855 = vmax.f32 %v711, 0.0
        %v856 = vmax.f32 %v713, 0.0
        %v857 = vmax.f32 %v717, 0.0
        %v858 = vmax.f32 %v719, 0.0
        %v859 = vmax.f32 %v721, 0.0
        %v860 = vmax.f32 %v723, 0.0
        %v861 = vmax.f32 %v727, 0.0
        %v862 = vmax.f32 %v729, 0.0
        %v863 = vmax.f32 %v731, 0.0
        %v864 = vmax.f32 %v733, 0.0
        %v865 = vmax.f32 %v737, 0.0
        %v866 = vmax.f32 %v739, 0.0
        %v867 = vmax.f32 %v741, 0.0
        %v868 = vmax.f32 %v743, 0.0
        %v869 = vmax.f32 %v747, 0.0
        %v870 = vmax.f32 %v749, 0.0
        %v871 = vmax.f32 %v751, 0.0
        %v872 = vmax.f32 %v753, 0.0
        %v873 = vmax.f32 %v757, 0.0
        %v874 = vmax.f32 %v759, 0.0
        %v875 = vmax.f32 %v761, 0.0
        %v876 = vmax.f32 %v763, 0.0
        %v877 = vmax.f32 %v767, 0.0
        %v878 = vmax.f32 %v769, 0.0
        %v879 = vmax.f32 %v771, 0.0
        %v880 = vmax.f32 %v773, 0.0
        %v881 = vmax.f32 %v777, 0.0
        %v882 = vmax.f32 %v779, 0.0
        %v883 = vmax.f32 %v781, 0.0
        %v884 = vmax.f32 %v783, 0.0
        %v885 = vmax.f32 %v787, 0.0
        %v886 = vmax.f32 %v789, 0.0
        %v887 = vmax.f32 %v791, 0.0
        %v888 = vmax.f32 %v793, 0.0
        %v889 = vmax.f32 %v797, 0.0
        %v890 = vmax.f32 %v799, 0.0
        %v891 = vmax.f32 %v801, 0.0
        %v892 = vmax.f32 %v803, 0.0
        %v893 = vmax.f32 %v807, 0.0
        %v894 = vmax.f32 %v809, 0.0
        %v895 = vmax.f32 %v811, 0.0
        %v896 = vmax.f32 %v813, 0.0
        %v897 = vmax.f32 %v817, 0.0
        %v898 = vmax.f32 %v819, 0.0
        %v899 = vmax.f32 %v821, 0.0
        %v900 = vmax.f32 %v823, 0.0
        %v901 = vmax.f32 %v827, 0.0
        %v902 = vmax.f32 %v829, 0.0
        %v903 = vmax.f32 %v831, 0.0
        %v904 = vmax.f32 %v833, 0.0
        %v905 = vmax.f32 %v837, 0.0
        %v906 = vmax.f32 %v839, 0.0
        %v907 = vmax.f32 %v841, 0.0
        %v908 = vmax.f32 %v843, 0.0
        %v909 = vpack.c.bf16 %v847, %v845
        %v910 = vpack.c.bf16 %v848, %v846
        %v911 = vpack.c.bf16 %v851, %v849
        %v912 = vpack.c.bf16 %v852, %v850
        %v913 = vpack.c.bf16 %v855, %v853
        %v914 = vpack.c.bf16 %v856, %v854
        %v915 = vpack.c.bf16 %v859, %v857
        %v916 = vpack.c.bf16 %v860, %v858
        %v917 = vpack.c.bf16 %v863, %v861
        %v918 = vpack.c.bf16 %v864, %v862
        %v919 = vpack.c.bf16 %v867, %v865
        %v920 = vpack.c.bf16 %v868, %v866
        %v921 = vpack.c.bf16 %v871, %v869
        %v922 = vpack.c.bf16 %v872, %v870
        %v923 = vpack.c.bf16 %v875, %v873
        %v924 = vpack.c.bf16 %v876, %v874
        %v925 = vpack.c.bf16 %v879, %v877
        %v926 = vpack.c.bf16 %v880, %v878
        %v927 = vpack.c.bf16 %v883, %v881
        %v928 = vpack.c.bf16 %v884, %v882
        %v929 = vpack.c.bf16 %v887, %v885
        %v930 = vpack.c.bf16 %v888, %v886
        %v931 = vpack.c.bf16 %v891, %v889
        %v932 = vpack.c.bf16 %v892, %v890
        %v933 = vpack.c.bf16 %v895, %v893
        %v934 = vpack.c.bf16 %v896, %v894
        %v935 = vpack.c.bf16 %v899, %v897
        %v936 = vpack.c.bf16 %v900, %v898
        %v937 = vpack.c.bf16 %v903, %v901
        %v938 = vpack.c.bf16 %v904, %v902
        %v939 = vpack.c.bf16 %v907, %v905
        %v940 = vpack.c.bf16 %v908, %v906
        %v941 = vld [vmem:[%s4] sm:$0xf]
        %v942 = vld [vmem:[%s4 + $0x4] sm:$0xf]
        %v943 = vld [vmem:[%s4 + $0x8] sm:$0xf]
        %v944 = vld [vmem:[%s4 + $0xc] sm:$0xf]
        %v945 = vld [vmem:[%s4 + $0x10] sm:$0xf]
        %v946 = vld [vmem:[%s4 + $0x14] sm:$0xf]
        %v947 = vld [vmem:[%s4 + $0x18] sm:$0xf]
        %v948 = vld [vmem:[%s4 + $0x1c] sm:$0xf]
        %v949 = vld [vmem:[%s4 + $0x20] sm:$0xf]
        %v950 = vld [vmem:[%s4 + $0x24] sm:$0xf]
        %v951 = vld [vmem:[%s4 + $0x28] sm:$0xf]
        %v952 = vld [vmem:[%s4 + $0x2c] sm:$0xf]
        %v953 = vld [vmem:[%s4 + $0x30] sm:$0xf]
        %v954 = vld [vmem:[%s4 + $0x34] sm:$0xf]
        %v955 = vld [vmem:[%s4 + $0x38] sm:$0xf]
        %v956 = vld [vmem:[%s4 + $0x3c] sm:$0xf]
        %v957 = vld [vmem:[%s4 + $0x40] sm:$0xf]
        %v958 = vld [vmem:[%s4 + $0x44] sm:$0xf]
        %v959 = vld [vmem:[%s4 + $0x48] sm:$0xf]
        %v960 = vld [vmem:[%s4 + $0x4c] sm:$0xf]
        %v961 = vld [vmem:[%s4 + $0x50] sm:$0xf]
        %v962 = vld [vmem:[%s4 + $0x54] sm:$0xf]
        %v963 = vld [vmem:[%s4 + $0x58] sm:$0xf]
        %v964 = vld [vmem:[%s4 + $0x5c] sm:$0xf]
        %v965 = vld [vmem:[%s4 + $0x60] sm:$0xf]
        %v966 = vld [vmem:[%s4 + $0x64] sm:$0xf]
        %v967 = vld [vmem:[%s4 + $0x68] sm:$0xf]
        %v968 = vld [vmem:[%s4 + $0x6c] sm:$0xf]
        %v969 = vld [vmem:[%s4 + $0x70] sm:$0xf]
        %v970 = vld [vmem:[%s4 + $0x74] sm:$0xf]
        %v971 = vld [vmem:[%s4 + $0x78] sm:$0xf]
        %v972 = vld [vmem:[%s4 + $0x7c] sm:$0xf]
        %v973 = vld [vmem:[%s5] sm:$0x1]
        %v975 = vlaneseq
        %v976 = vshrl.u32 %v975, 7
        %v977 = vsub.s32 0, %v976
        %v978 = vrot.slane %v973, %v977
        %v1012 = vunpack.c.l.b16 %v941
        %v1013 = vunpack.c.l.b16 %v942
        %v1014 = vunpack.c.l.b16 %v943
        %v1015 = vunpack.c.l.b16 %v944
        %v1016 = vunpack.c.l.b16 %v945
        %v1017 = vunpack.c.l.b16 %v946
        %v1018 = vunpack.c.l.b16 %v947
        %v1019 = vunpack.c.l.b16 %v948
        %v1020 = vunpack.c.l.b16 %v949
        %v1021 = vunpack.c.l.b16 %v950
        %v1022 = vunpack.c.l.b16 %v951
        %v1023 = vunpack.c.l.b16 %v952
        %v1024 = vunpack.c.l.b16 %v953
        %v1025 = vunpack.c.l.b16 %v954
        %v1026 = vunpack.c.l.b16 %v955
        %v1027 = vunpack.c.l.b16 %v956
        %v1028 = vunpack.c.l.b16 %v957
        %v1029 = vunpack.c.l.b16 %v958
        %v1030 = vunpack.c.l.b16 %v959
        %v1031 = vunpack.c.l.b16 %v960
        %v1032 = vunpack.c.l.b16 %v961
        %v1033 = vunpack.c.l.b16 %v962
        %v1034 = vunpack.c.l.b16 %v963
        %v1035 = vunpack.c.l.b16 %v964
        %v1036 = vunpack.c.l.b16 %v965
        %v1037 = vunpack.c.l.b16 %v966
        %v1038 = vunpack.c.l.b16 %v967
        %v1039 = vunpack.c.l.b16 %v968
        %v1040 = vunpack.c.l.b16 %v969
        %v1041 = vunpack.c.l.b16 %v970
        %v1042 = vunpack.c.l.b16 %v971
        %v1043 = vunpack.c.l.b16 %v972
        %v1044 = vpack.c.b16 %v1013, %v1012
        %v1045 = vpack.c.b16 %v1015, %v1014
        %v1046 = vpack.c.b16 %v1017, %v1016
        %v1047 = vpack.c.b16 %v1019, %v1018
        %v1048 = vpack.c.b16 %v1021, %v1020
        %v1049 = vpack.c.b16 %v1023, %v1022
        %v1050 = vpack.c.b16 %v1025, %v1024
        %v1051 = vpack.c.b16 %v1027, %v1026
        %v1052 = vpack.c.b16 %v1029, %v1028
        %v1053 = vpack.c.b16 %v1031, %v1030
        %v1054 = vpack.c.b16 %v1033, %v1032
        %v1055 = vpack.c.b16 %v1035, %v1034
        %v1056 = vpack.c.b16 %v1037, %v1036
        %v1057 = vpack.c.b16 %v1039, %v1038
        %v1058 = vpack.c.b16 %v1041, %v1040
        %v1059 = vpack.c.b16 %v1043, %v1042
        %1076 = vmatprep.subr.bf16.mxu0 0
        %1077 = vmatpush1.bf16.msra.mxu0 %v1044
        %1078 = vmatprep.subr.bf16.mxu0 0
        %1079 = vmatpush1.bf16.msra.mxu0 %v1045
        %1080 = vmatprep.subr.bf16.mxu0 0
        %1081 = vmatpush1.bf16.msra.mxu0 %v1046
        %1082 = vmatprep.subr.bf16.mxu0 0
        %1083 = vmatpush1.bf16.msra.mxu0 %v1047
        %1084 = vmatprep.subr.bf16.mxu0 0
        %1085 = vmatpush1.bf16.msra.mxu0 %v1048
        %1086 = vmatprep.subr.bf16.mxu0 0
        %1087 = vmatpush1.bf16.msra.mxu0 %v1049
        %1088 = vmatprep.subr.bf16.mxu0 0
        %1089 = vmatpush1.bf16.msra.mxu0 %v1050
        %1090 = vmatprep.subr.bf16.mxu0 0
        %1091 = vmatpush1.bf16.msra.mxu0 %v1051
        %1092 = vmatprep.subr.bf16.mxu0 0
        %1093 = vmatpush1.bf16.msra.mxu0 %v1052
        %1094 = vmatprep.subr.bf16.mxu0 0
        %1095 = vmatpush1.bf16.msra.mxu0 %v1053
        %1096 = vmatprep.subr.bf16.mxu0 0
        %1097 = vmatpush1.bf16.msra.mxu0 %v1054
        %1098 = vmatprep.subr.bf16.mxu0 0
        %1099 = vmatpush1.bf16.msra.mxu0 %v1055
        %1100 = vmatprep.subr.bf16.mxu0 0
        %1101 = vmatpush1.bf16.msra.mxu0 %v1056
        %1102 = vmatprep.subr.bf16.mxu0 0
        %1103 = vmatpush1.bf16.msra.mxu0 %v1057
        %1104 = vmatprep.subr.bf16.mxu0 0
        %1105 = vmatpush1.bf16.msra.mxu0 %v1058
        %1106 = vmatprep.subr.bf16.mxu0 0
        %1107 = vmatpush1.bf16.msra.mxu0 %v1059
        %1108 = vmatprep.mubr.bf16.mxu0 %v910
        %1109 = vmatmul.mubr.bf16.gmra.mrb[0].mxu0 %v909
        %v1110 = vpop.f32.mrb[0].mxu0
        %v1111 = vadd.f32 %v978, %v1110
        %v1112 = vpop.f32.mrb[0].mxu0
        %v1113 = vpop.f32.mrb[0].mxu0
        %v1114 = vadd.f32 %v978, %v1113
        %v1115 = vpop.f32.mrb[0].mxu0
        %1116 = vmatprep.mubr.bf16.mxu0 %v912
        %1117 = vmatmul.mubr.bf16.gmra.mrb[0].mxu0 %v911
        %v1118 = vpop.f32.mrb[0].mxu0
        %v1119 = vadd.f32 %v978, %v1118
        %v1120 = vpop.f32.mrb[0].mxu0
        %v1121 = vpop.f32.mrb[0].mxu0
        %v1122 = vadd.f32 %v978, %v1121
        %v1123 = vpop.f32.mrb[0].mxu0
        %1124 = vmatprep.mubr.bf16.mxu0 %v914
        %1125 = vmatmul.mubr.bf16.gmra.mrb[0].mxu0 %v913
        %v1126 = vpop.f32.mrb[0].mxu0
        %v1127 = vadd.f32 %v978, %v1126
        %v1128 = vpop.f32.mrb[0].mxu0
        %v1129 = vpop.f32.mrb[0].mxu0
        %v1130 = vadd.f32 %v978, %v1129
        %v1131 = vpop.f32.mrb[0].mxu0
        %1132 = vmatprep.mubr.bf16.mxu0 %v916
        %1133 = vmatmul.mubr.bf16.gmra.mrb[0].mxu0 %v915
        %v1134 = vpop.f32.mrb[0].mxu0
        %v1135 = vadd.f32 %v978, %v1134
        %v1136 = vpop.f32.mrb[0].mxu0
        %v1137 = vpop.f32.mrb[0].mxu0
        %v1138 = vadd.f32 %v978, %v1137
        %v1139 = vpop.f32.mrb[0].mxu0
        %1140 = vmatprep.mubr.bf16.mxu0 %v918
        %1141 = vmatmul.mubr.bf16.gmra.mrb[0].mxu0 %v917
        %v1142 = vpop.f32.mrb[0].mxu0
        %v1143 = vadd.f32 %v978, %v1142
        %v1144 = vpop.f32.mrb[0].mxu0
        %v1145 = vpop.f32.mrb[0].mxu0
        %v1146 = vadd.f32 %v978, %v1145
        %v1147 = vpop.f32.mrb[0].mxu0
        %1148 = vmatprep.mubr.bf16.mxu0 %v920
        %1149 = vmatmul.mubr.bf16.gmra.mrb[0].mxu0 %v919
        %v1150 = vpop.f32.mrb[0].mxu0
        %v1151 = vadd.f32 %v978, %v1150
        %v1152 = vpop.f32.mrb[0].mxu0
        %v1153 = vpop.f32.mrb[0].mxu0
        %v1154 = vadd.f32 %v978, %v1153
        %v1155 = vpop.f32.mrb[0].mxu0
        %1156 = vmatprep.mubr.bf16.mxu0 %v922
        %1157 = vmatmul.mubr.bf16.gmra.mrb[0].mxu0 %v921
        %v1158 = vpop.f32.mrb[0].mxu0
        %v1159 = vadd.f32 %v978, %v1158
        %v1160 = vpop.f32.mrb[0].mxu0
        %v1161 = vpop.f32.mrb[0].mxu0
        %v1162 = vadd.f32 %v978, %v1161
        %v1163 = vpop.f32.mrb[0].mxu0
        %1164 = vmatprep.mubr.bf16.mxu0 %v924
        %1165 = vmatmul.mubr.bf16.gmra.mrb[0].mxu0 %v923
        %v1166 = vpop.f32.mrb[0].mxu0
        %v1167 = vadd.f32 %v978, %v1166
        %v1168 = vpop.f32.mrb[0].mxu0
        %v1169 = vpop.f32.mrb[0].mxu0
        %v1170 = vadd.f32 %v978, %v1169
        %v1171 = vpop.f32.mrb[0].mxu0
        %1172 = vmatprep.mubr.bf16.mxu0 %v926
        %1173 = vmatmul.mubr.bf16.gmra.mrb[0].mxu0 %v925
        %v1174 = vpop.f32.mrb[0].mxu0
        %v1175 = vadd.f32 %v978, %v1174
        %v1176 = vpop.f32.mrb[0].mxu0
        %v1177 = vpop.f32.mrb[0].mxu0
        %v1178 = vadd.f32 %v978, %v1177
        %v1179 = vpop.f32.mrb[0].mxu0
        %1180 = vmatprep.mubr.bf16.mxu0 %v928
        %1181 = vmatmul.mubr.bf16.gmra.mrb[0].mxu0 %v927
        %v1182 = vpop.f32.mrb[0].mxu0
        %v1183 = vadd.f32 %v978, %v1182
        %v1184 = vpop.f32.mrb[0].mxu0
        %v1185 = vpop.f32.mrb[0].mxu0
        %v1186 = vadd.f32 %v978, %v1185
        %v1187 = vpop.f32.mrb[0].mxu0
        %1188 = vmatprep.mubr.bf16.mxu0 %v930
        %1189 = vmatmul.mubr.bf16.gmra.mrb[0].mxu0 %v929
        %v1190 = vpop.f32.mrb[0].mxu0
        %v1191 = vadd.f32 %v978, %v1190
        %v1192 = vpop.f32.mrb[0].mxu0
        %v1193 = vpop.f32.mrb[0].mxu0
        %v1194 = vadd.f32 %v978, %v1193
        %v1195 = vpop.f32.mrb[0].mxu0
        %1196 = vmatprep.mubr.bf16.mxu0 %v932
        %1197 = vmatmul.mubr.bf16.gmra.mrb[0].mxu0 %v931
        %v1198 = vpop.f32.mrb[0].mxu0
        %v1199 = vadd.f32 %v978, %v1198
        %v1200 = vpop.f32.mrb[0].mxu0
        %v1201 = vpop.f32.mrb[0].mxu0
        %v1202 = vadd.f32 %v978, %v1201
        %v1203 = vpop.f32.mrb[0].mxu0
        %1204 = vmatprep.mubr.bf16.mxu0 %v934
        %1205 = vmatmul.mubr.bf16.gmra.mrb[0].mxu0 %v933
        %v1206 = vpop.f32.mrb[0].mxu0
        %v1207 = vadd.f32 %v978, %v1206
        %v1208 = vpop.f32.mrb[0].mxu0
        %v1209 = vpop.f32.mrb[0].mxu0
        %v1210 = vadd.f32 %v978, %v1209
        %v1211 = vpop.f32.mrb[0].mxu0
        %1212 = vmatprep.mubr.bf16.mxu0 %v936
        %1213 = vmatmul.mubr.bf16.gmra.mrb[0].mxu0 %v935
        %v1214 = vpop.f32.mrb[0].mxu0
        %v1215 = vadd.f32 %v978, %v1214
        %v1216 = vpop.f32.mrb[0].mxu0
        %v1217 = vpop.f32.mrb[0].mxu0
        %v1218 = vadd.f32 %v978, %v1217
        %v1219 = vpop.f32.mrb[0].mxu0
        %1220 = vmatprep.mubr.bf16.mxu0 %v938
        %1221 = vmatmul.mubr.bf16.gmra.mrb[0].mxu0 %v937
        %v1222 = vpop.f32.mrb[0].mxu0
        %v1223 = vadd.f32 %v978, %v1222
        %v1224 = vpop.f32.mrb[0].mxu0
        %v1225 = vpop.f32.mrb[0].mxu0
        %v1226 = vadd.f32 %v978, %v1225
        %v1227 = vpop.f32.mrb[0].mxu0
        %1228 = vmatprep.mubr.bf16.mxu0 %v940
        %1229 = vmatmul.mubr.bf16.gmra.mrb[0].mxu0 %v939
        %v1230 = vpop.f32.mrb[0].mxu0
        %v1231 = vadd.f32 %v978, %v1230
        %v1232 = vpop.f32.mrb[0].mxu0
        %v1233 = vpop.f32.mrb[0].mxu0
        %v1234 = vadd.f32 %v978, %v1233
        %v1235 = vpop.f32.mrb[0].mxu0
        %1236 = vdwg.mxu0
        %v1237 = vmul.f32 %v1111, 0.5
        %v1238 = vmul.f32 %v1114, 0.5
        %v1239 = vmul.f32 %v1119, 0.5
        %v1240 = vmul.f32 %v1122, 0.5
        %v1241 = vmul.f32 %v1127, 0.5
        %v1242 = vmul.f32 %v1130, 0.5
        %v1243 = vmul.f32 %v1135, 0.5
        %v1244 = vmul.f32 %v1138, 0.5
        %v1245 = vmul.f32 %v1143, 0.5
        %v1246 = vmul.f32 %v1146, 0.5
        %v1247 = vmul.f32 %v1151, 0.5
        %v1248 = vmul.f32 %v1154, 0.5
        %v1249 = vmul.f32 %v1159, 0.5
        %v1250 = vmul.f32 %v1162, 0.5
        %v1251 = vmul.f32 %v1167, 0.5
        %v1252 = vmul.f32 %v1170, 0.5
        %v1253 = vmul.f32 %v1175, 0.5
        %v1254 = vmul.f32 %v1178, 0.5
        %v1255 = vmul.f32 %v1183, 0.5
        %v1256 = vmul.f32 %v1186, 0.5
        %v1257 = vmul.f32 %v1191, 0.5
        %v1258 = vmul.f32 %v1194, 0.5
        %v1259 = vmul.f32 %v1199, 0.5
        %v1260 = vmul.f32 %v1202, 0.5
        %v1261 = vmul.f32 %v1207, 0.5
        %v1262 = vmul.f32 %v1210, 0.5
        %v1263 = vmul.f32 %v1215, 0.5
        %v1264 = vmul.f32 %v1218, 0.5
        %v1265 = vmul.f32 %v1223, 0.5
        %v1266 = vmul.f32 %v1226, 0.5
        %v1267 = vmul.f32 %v1231, 0.5
        %v1268 = vmul.f32 %v1234, 0.5
        %v1269 = vmul.f32 %v1237, 1.442695
        %v1270 = vpow.pop %v1269
        %v1271 = vmul.f32 %v1238, 1.442695
        %v1272 = vpow.pop %v1271
        %v1273 = vmul.f32 %v1239, 1.442695
        %v1274 = vpow.pop %v1273
        %v1275 = vmul.f32 %v1240, 1.442695
        %v1276 = vpow.pop %v1275
        %v1277 = vmul.f32 %v1241, 1.442695
        %v1278 = vpow.pop %v1277
        %v1279 = vmul.f32 %v1242, 1.442695
        %v1280 = vpow.pop %v1279
        %v1281 = vmul.f32 %v1243, 1.442695
        %v1282 = vpow.pop %v1281
        %v1283 = vmul.f32 %v1244, 1.442695
        %v1284 = vpow.pop %v1283
        %v1285 = vmul.f32 %v1245, 1.442695
        %v1286 = vpow.pop %v1285
        %v1287 = vmul.f32 %v1246, 1.442695
        %v1288 = vpow.pop %v1287
        %v1289 = vmul.f32 %v1247, 1.442695
        %v1290 = vpow.pop %v1289
        %v1291 = vmul.f32 %v1248, 1.442695
        %v1292 = vpow.pop %v1291
        %v1293 = vmul.f32 %v1249, 1.442695
        %v1294 = vpow.pop %v1293
        %v1295 = vmul.f32 %v1250, 1.442695
        %v1296 = vpow.pop %v1295
        %v1297 = vmul.f32 %v1251, 1.442695
        %v1298 = vpow.pop %v1297
        %v1299 = vmul.f32 %v1252, 1.442695
        %v1300 = vpow.pop %v1299
        %v1301 = vmul.f32 %v1253, 1.442695
        %v1302 = vpow.pop %v1301
        %v1303 = vmul.f32 %v1254, 1.442695
        %v1304 = vpow.pop %v1303
        %v1305 = vmul.f32 %v1255, 1.442695
        %v1306 = vpow.pop %v1305
        %v1307 = vmul.f32 %v1256, 1.442695
        %v1308 = vpow.pop %v1307
        %v1309 = vmul.f32 %v1257, 1.442695
        %v1310 = vpow.pop %v1309
        %v1311 = vmul.f32 %v1258, 1.442695
        %v1312 = vpow.pop %v1311
        %v1313 = vmul.f32 %v1259, 1.442695
        %v1314 = vpow.pop %v1313
        %v1315 = vmul.f32 %v1260, 1.442695
        %v1316 = vpow.pop %v1315
        %v1317 = vmul.f32 %v1261, 1.442695
        %v1318 = vpow.pop %v1317
        %v1319 = vmul.f32 %v1262, 1.442695
        %v1320 = vpow.pop %v1319
        %v1321 = vmul.f32 %v1263, 1.442695
        %v1322 = vpow.pop %v1321
        %v1323 = vmul.f32 %v1264, 1.442695
        %v1324 = vpow.pop %v1323
        %v1325 = vmul.f32 %v1265, 1.442695
        %v1326 = vpow.pop %v1325
        %v1327 = vmul.f32 %v1266, 1.442695
        %v1328 = vpow.pop %v1327
        %v1329 = vmul.f32 %v1267, 1.442695
        %v1330 = vpow.pop %v1329
        %v1331 = vmul.f32 %v1268, 1.442695
        %v1332 = vpow.pop %v1331
        %1365 = vrot.lane.b32.xlu0 %v1270, 112
        %v1366 = vpop.permute.xlu0 %1365
        %1367 = vrot.lane.b32.xlu0 %v1272, 112
        %v1368 = vpop.permute.xlu0 %1367
        %1369 = vrot.lane.b32.xlu0 %v1274, 112
        %v1370 = vpop.permute.xlu0 %1369
        %1371 = vrot.lane.b32.xlu0 %v1276, 112
        %v1372 = vpop.permute.xlu0 %1371
        %1373 = vrot.lane.b32.xlu0 %v1278, 112
        %v1374 = vpop.permute.xlu0 %1373
        %1375 = vrot.lane.b32.xlu0 %v1280, 112
        %v1376 = vpop.permute.xlu0 %1375
        %1377 = vrot.lane.b32.xlu0 %v1282, 112
        %v1378 = vpop.permute.xlu0 %1377
        %1379 = vrot.lane.b32.xlu0 %v1284, 112
        %v1380 = vpop.permute.xlu0 %1379
        %1381 = vrot.lane.b32.xlu0 %v1286, 112
        %v1382 = vpop.permute.xlu0 %1381
        %1383 = vrot.lane.b32.xlu0 %v1288, 112
        %v1384 = vpop.permute.xlu0 %1383
        %1385 = vrot.lane.b32.xlu0 %v1290, 112
        %v1386 = vpop.permute.xlu0 %1385
        %1387 = vrot.lane.b32.xlu0 %v1292, 112
        %v1388 = vpop.permute.xlu0 %1387
        %1389 = vrot.lane.b32.xlu0 %v1294, 112
        %v1390 = vpop.permute.xlu0 %1389
        %1391 = vrot.lane.b32.xlu0 %v1296, 112
        %v1392 = vpop.permute.xlu0 %1391
        %1393 = vrot.lane.b32.xlu0 %v1298, 112
        %v1394 = vpop.permute.xlu0 %1393
        %1395 = vrot.lane.b32.xlu0 %v1300, 112
        %v1396 = vpop.permute.xlu0 %1395
        %1397 = vrot.lane.b32.xlu0 %v1302, 112
        %v1398 = vpop.permute.xlu0 %1397
        %1399 = vrot.lane.b32.xlu0 %v1304, 112
        %v1400 = vpop.permute.xlu0 %1399
        %1401 = vrot.lane.b32.xlu0 %v1306, 112
        %v1402 = vpop.permute.xlu0 %1401
        %1403 = vrot.lane.b32.xlu0 %v1308, 112
        %v1404 = vpop.permute.xlu0 %1403
        %1405 = vrot.lane.b32.xlu0 %v1310, 112
        %v1406 = vpop.permute.xlu0 %1405
        %1407 = vrot.lane.b32.xlu0 %v1312, 112
        %v1408 = vpop.permute.xlu0 %1407
        %1409 = vrot.lane.b32.xlu0 %v1314, 112
        %v1410 = vpop.permute.xlu0 %1409
        %1411 = vrot.lane.b32.xlu0 %v1316, 112
        %v1412 = vpop.permute.xlu0 %1411
        %1413 = vrot.lane.b32.xlu0 %v1318, 112
        %v1414 = vpop.permute.xlu0 %1413
        %1415 = vrot.lane.b32.xlu0 %v1320, 112
        %v1416 = vpop.permute.xlu0 %1415
        %1417 = vrot.lane.b32.xlu0 %v1322, 112
        %v1418 = vpop.permute.xlu0 %1417
        %1419 = vrot.lane.b32.xlu0 %v1324, 112
        %v1420 = vpop.permute.xlu0 %1419
        %1421 = vrot.lane.b32.xlu0 %v1326, 112
        %v1422 = vpop.permute.xlu0 %1421
        %1423 = vrot.lane.b32.xlu0 %v1328, 112
        %v1424 = vpop.permute.xlu0 %1423
        %1425 = vrot.lane.b32.xlu0 %v1330, 112
        %v1426 = vpop.permute.xlu0 %1425
        %1427 = vrot.lane.b32.xlu0 %v1332, 112
        %v1428 = vpop.permute.xlu0 %1427
        %v1461 = vmul.f32 %v455, %v1366
        %v1462 = vmul.f32 %v456, %v1368
        %v1463 = vmul.f32 %v457, %v1370
        %v1464 = vmul.f32 %v458, %v1372
        %v1465 = vmul.f32 %v459, %v1374
        %v1466 = vmul.f32 %v460, %v1376
        %v1467 = vmul.f32 %v461, %v1378
        %v1468 = vmul.f32 %v462, %v1380
        %v1469 = vmul.f32 %v463, %v1382
        %v1470 = vmul.f32 %v464, %v1384
        %v1471 = vmul.f32 %v465, %v1386
        %v1472 = vmul.f32 %v466, %v1388
        %v1473 = vmul.f32 %v467, %v1390
        %v1474 = vmul.f32 %v468, %v1392
        %v1475 = vmul.f32 %v469, %v1394
        %v1476 = vmul.f32 %v470, %v1396
        %v1477 = vmul.f32 %v471, %v1398
        %v1478 = vmul.f32 %v472, %v1400
        %v1479 = vmul.f32 %v473, %v1402
        %v1480 = vmul.f32 %v474, %v1404
        %v1481 = vmul.f32 %v475, %v1406
        %v1482 = vmul.f32 %v476, %v1408
        %v1483 = vmul.f32 %v477, %v1410
        %v1484 = vmul.f32 %v478, %v1412
        %v1485 = vmul.f32 %v479, %v1414
        %v1486 = vmul.f32 %v480, %v1416
        %v1487 = vmul.f32 %v481, %v1418
        %v1488 = vmul.f32 %v482, %v1420
        %v1489 = vmul.f32 %v483, %v1422
        %v1490 = vmul.f32 %v484, %v1424
        %v1491 = vmul.f32 %v485, %v1426
        %v1492 = vmul.f32 %v486, %v1428
        %v1493 = vadd.f32 %v1111, %v1461
        %v1494 = vadd.f32 %v1114, %v1462
        %v1495 = vadd.f32 %v1119, %v1463
        %v1496 = vadd.f32 %v1122, %v1464
        %v1497 = vadd.f32 %v1127, %v1465
        %v1498 = vadd.f32 %v1130, %v1466
        %v1499 = vadd.f32 %v1135, %v1467
        %v1500 = vadd.f32 %v1138, %v1468
        %v1501 = vadd.f32 %v1143, %v1469
        %v1502 = vadd.f32 %v1146, %v1470
        %v1503 = vadd.f32 %v1151, %v1471
        %v1504 = vadd.f32 %v1154, %v1472
        %v1505 = vadd.f32 %v1159, %v1473
        %v1506 = vadd.f32 %v1162, %v1474
        %v1507 = vadd.f32 %v1167, %v1475
        %v1508 = vadd.f32 %v1170, %v1476
        %v1509 = vadd.f32 %v1175, %v1477
        %v1510 = vadd.f32 %v1178, %v1478
        %v1511 = vadd.f32 %v1183, %v1479
        %v1512 = vadd.f32 %v1186, %v1480
        %v1513 = vadd.f32 %v1191, %v1481
        %v1514 = vadd.f32 %v1194, %v1482
        %v1515 = vadd.f32 %v1199, %v1483
        %v1516 = vadd.f32 %v1202, %v1484
        %v1517 = vadd.f32 %v1207, %v1485
        %v1518 = vadd.f32 %v1210, %v1486
        %v1519 = vadd.f32 %v1215, %v1487
        %v1520 = vadd.f32 %v1218, %v1488
        %v1521 = vadd.f32 %v1223, %v1489
        %v1522 = vadd.f32 %v1226, %v1490
        %v1523 = vadd.f32 %v1231, %v1491
        %v1524 = vadd.f32 %v1234, %v1492
        %v1525 = vpack.c.bf16 %v1494, %v1493
        %v1526 = vpack.c.bf16 %v1496, %v1495
        %v1527 = vpack.c.bf16 %v1498, %v1497
        %v1528 = vpack.c.bf16 %v1500, %v1499
        %v1529 = vpack.c.bf16 %v1502, %v1501
        %v1530 = vpack.c.bf16 %v1504, %v1503
        %v1531 = vpack.c.bf16 %v1506, %v1505
        %v1532 = vpack.c.bf16 %v1508, %v1507
        %v1533 = vpack.c.bf16 %v1510, %v1509
        %v1534 = vpack.c.bf16 %v1512, %v1511
        %v1535 = vpack.c.bf16 %v1514, %v1513
        %v1536 = vpack.c.bf16 %v1516, %v1515
        %v1537 = vpack.c.bf16 %v1518, %v1517
        %v1538 = vpack.c.bf16 %v1520, %v1519
        %v1539 = vpack.c.bf16 %v1522, %v1521
        %v1540 = vpack.c.bf16 %v1524, %v1523
        %v1541 = vld [vmem:[%s6] sm:$0xff]
        %v1542 = vld [vmem:[%s6 + $0x8] sm:$0xff]
        %v1543 = vld [vmem:[%s7] sm:$0x3]
        %v1545 = vlaneseq
        %v1546 = vshrl.u32 %v1545, 7
        %v1547 = vsub.s32 0, %v1546
        %v1548 = vrot.slane %v1543, %v1547
        %v1549 = vlaneseq
        %v1550 = vshrl.u32 %v1549, 7
        %v1551 = vsub.s32 1, %v1550
        %v1552 = vrot.slane %v1543, %v1551
        %v1557 = vunpack.c.l.b16 %v1541
        %v1558 = vunpack.c.h.b16 %v1541
        %v1559 = vunpack.c.l.b16 %v1542
        %v1560 = vunpack.c.h.b16 %v1542
        %v1561 = vpack.c.b16 %v1559, %v1557
        %v1562 = vpack.c.b16 %v1560, %v1558
        %vm1565 = vcmask 130048
        %v1567 = vsel %vm1565, %v1525, 0
        %v1570 = vsel %vm1565, %v1526, 0
        %v1573 = vsel %vm1565, %v1527, 0
        %v1576 = vsel %vm1565, %v1528, 0
        %v1579 = vsel %vm1565, %v1529, 0
        %v1582 = vsel %vm1565, %v1530, 0
        %v1585 = vsel %vm1565, %v1531, 0
        %v1588 = vsel %vm1565, %v1532, 0
        %v1591 = vsel %vm1565, %v1533, 0
        %v1594 = vsel %vm1565, %v1534, 0
        %v1597 = vsel %vm1565, %v1535, 0
        %v1600 = vsel %vm1565, %v1536, 0
        %v1603 = vsel %vm1565, %v1537, 0
        %v1606 = vsel %vm1565, %v1538, 0
        %v1609 = vsel %vm1565, %v1539, 0
        %v1612 = vsel %vm1565, %v1540, 0
        %1614 = vmatprep.subr.bf16.mxu0 %v1562
        %1615 = vmatpush1.bf16.msra.mxu0 %v1561
        %1616 = vmatprep.subr.bf16.mxu0 0
        %1617 = vmatpush1.bf16.msra.mxu0 0
        %1618 = vmatprep.subr.bf16.mxu0 0
        %1619 = vmatpush1.bf16.msra.mxu0 0
        %1620 = vmatprep.subr.bf16.mxu0 0
        %1621 = vmatpush1.bf16.msra.mxu0 0
        %1622 = vmatprep.subr.bf16.mxu0 0
        %1623 = vmatpush1.bf16.msra.mxu0 0
        %1624 = vmatprep.subr.bf16.mxu0 0
        %1625 = vmatpush1.bf16.msra.mxu0 0
        %1626 = vmatprep.subr.bf16.mxu0 0
        %1627 = vmatpush1.bf16.msra.mxu0 0
        %1628 = vmatprep.subr.bf16.mxu0 0
        %1629 = vmatpush1.bf16.msra.mxu0 0
        %1630 = vmatprep.subr.bf16.mxu0 0
        %1631 = vmatpush1.bf16.msra.mxu0 0
        %1632 = vmatprep.subr.bf16.mxu0 0
        %1633 = vmatpush1.bf16.msra.mxu0 0
        %1634 = vmatprep.subr.bf16.mxu0 0
        %1635 = vmatpush1.bf16.msra.mxu0 0
        %1636 = vmatprep.subr.bf16.mxu0 0
        %1637 = vmatpush1.bf16.msra.mxu0 0
        %1638 = vmatprep.subr.bf16.mxu0 0
        %1639 = vmatpush1.bf16.msra.mxu0 0
        %1640 = vmatprep.subr.bf16.mxu0 0
        %1641 = vmatpush1.bf16.msra.mxu0 0
        %1642 = vmatprep.subr.bf16.mxu0 0
        %1643 = vmatpush1.bf16.msra.mxu0 0
        %1644 = vmatprep.subr.bf16.mxu0 0
        %1645 = vmatpush1.bf16.msra.mxu0 0
        %1646 = vmatprep.mubr.bf16.mxu0 0
        %1647 = vmatmul.mubr.bf16.gmra.mrb[0].mxu0 %v1567
        %v1648 = vpop.f32.mrb[0].mxu0
        %v1649 = vadd.f32 %v1548, %v1648
        %v1650 = vpop.f32.mrb[0].mxu0
        %v1651 = vadd.f32 %v1552, %v1650
        %v1652 = vpop.f32.mrb[0].mxu0
        %v1653 = vadd.f32 %v1548, %v1652
        %v1654 = vpop.f32.mrb[0].mxu0
        %v1655 = vadd.f32 %v1552, %v1654
        %1656 = vmatprep.mubr.bf16.mxu0 0
        %1657 = vmatmul.mubr.bf16.gmra.mrb[0].mxu0 %v1570
        %v1658 = vpop.f32.mrb[0].mxu0
        %v1659 = vadd.f32 %v1548, %v1658
        %v1660 = vpop.f32.mrb[0].mxu0
        %v1661 = vadd.f32 %v1552, %v1660
        %v1662 = vpop.f32.mrb[0].mxu0
        %v1663 = vadd.f32 %v1548, %v1662
        %v1664 = vpop.f32.mrb[0].mxu0
        %v1665 = vadd.f32 %v1552, %v1664
        %1666 = vmatprep.mubr.bf16.mxu0 0
        %1667 = vmatmul.mubr.bf16.gmra.mrb[0].mxu0 %v1573
        %v1668 = vpop.f32.mrb[0].mxu0
        %v1669 = vadd.f32 %v1548, %v1668
        %v1670 = vpop.f32.mrb[0].mxu0
        %v1671 = vadd.f32 %v1552, %v1670
        %v1672 = vpop.f32.mrb[0].mxu0
        %v1673 = vadd.f32 %v1548, %v1672
        %v1674 = vpop.f32.mrb[0].mxu0
        %v1675 = vadd.f32 %v1552, %v1674
        %1676 = vmatprep.mubr.bf16.mxu0 0
        %1677 = vmatmul.mubr.bf16.gmra.mrb[0].mxu0 %v1576
        %v1678 = vpop.f32.mrb[0].mxu0
        %v1679 = vadd.f32 %v1548, %v1678
        %v1680 = vpop.f32.mrb[0].mxu0
        %v1681 = vadd.f32 %v1552, %v1680
        %v1682 = vpop.f32.mrb[0].mxu0
        %v1683 = vadd.f32 %v1548, %v1682
        %v1684 = vpop.f32.mrb[0].mxu0
        %v1685 = vadd.f32 %v1552, %v1684
        %1686 = vmatprep.mubr.bf16.mxu0 0
        %1687 = vmatmul.mubr.bf16.gmra.mrb[0].mxu0 %v1579
        %v1688 = vpop.f32.mrb[0].mxu0
        %v1689 = vadd.f32 %v1548, %v1688
        %v1690 = vpop.f32.mrb[0].mxu0
        %v1691 = vadd.f32 %v1552, %v1690
        %v1692 = vpop.f32.mrb[0].mxu0
        %v1693 = vadd.f32 %v1548, %v1692
        %v1694 = vpop.f32.mrb[0].mxu0
        %v1695 = vadd.f32 %v1552, %v1694
        %1696 = vmatprep.mubr.bf16.mxu0 0
        %1697 = vmatmul.mubr.bf16.gmra.mrb[0].mxu0 %v1582
        %v1698 = vpop.f32.mrb[0].mxu0
        %v1699 = vadd.f32 %v1548, %v1698
        %v1700 = vpop.f32.mrb[0].mxu0
        %v1701 = vadd.f32 %v1552, %v1700
        %v1702 = vpop.f32.mrb[0].mxu0
        %v1703 = vadd.f32 %v1548, %v1702
        %v1704 = vpop.f32.mrb[0].mxu0
        %v1705 = vadd.f32 %v1552, %v1704
        %1706 = vmatprep.mubr.bf16.mxu0 0
        %1707 = vmatmul.mubr.bf16.gmra.mrb[0].mxu0 %v1585
        %v1708 = vpop.f32.mrb[0].mxu0
        %v1709 = vadd.f32 %v1548, %v1708
        %v1710 = vpop.f32.mrb[0].mxu0
        %v1711 = vadd.f32 %v1552, %v1710
        %v1712 = vpop.f32.mrb[0].mxu0
        %v1713 = vadd.f32 %v1548, %v1712
        %v1714 = vpop.f32.mrb[0].mxu0
        %v1715 = vadd.f32 %v1552, %v1714
        %1716 = vmatprep.mubr.bf16.mxu0 0
        %1717 = vmatmul.mubr.bf16.gmra.mrb[0].mxu0 %v1588
        %v1718 = vpop.f32.mrb[0].mxu0
        %v1719 = vadd.f32 %v1548, %v1718
        %v1720 = vpop.f32.mrb[0].mxu0
        %v1721 = vadd.f32 %v1552, %v1720
        %v1722 = vpop.f32.mrb[0].mxu0
        %v1723 = vadd.f32 %v1548, %v1722
        %v1724 = vpop.f32.mrb[0].mxu0
        %v1725 = vadd.f32 %v1552, %v1724
        %1726 = vmatprep.mubr.bf16.mxu0 0
        %1727 = vmatmul.mubr.bf16.gmra.mrb[0].mxu0 %v1591
        %v1728 = vpop.f32.mrb[0].mxu0
        %v1729 = vadd.f32 %v1548, %v1728
        %v1730 = vpop.f32.mrb[0].mxu0
        %v1731 = vadd.f32 %v1552, %v1730
        %v1732 = vpop.f32.mrb[0].mxu0
        %v1733 = vadd.f32 %v1548, %v1732
        %v1734 = vpop.f32.mrb[0].mxu0
        %v1735 = vadd.f32 %v1552, %v1734
        %1736 = vmatprep.mubr.bf16.mxu0 0
        %1737 = vmatmul.mubr.bf16.gmra.mrb[0].mxu0 %v1594
        %v1738 = vpop.f32.mrb[0].mxu0
        %v1739 = vadd.f32 %v1548, %v1738
        %v1740 = vpop.f32.mrb[0].mxu0
        %v1741 = vadd.f32 %v1552, %v1740
        %v1742 = vpop.f32.mrb[0].mxu0
        %v1743 = vadd.f32 %v1548, %v1742
        %v1744 = vpop.f32.mrb[0].mxu0
        %v1745 = vadd.f32 %v1552, %v1744
        %1746 = vmatprep.mubr.bf16.mxu0 0
        %1747 = vmatmul.mubr.bf16.gmra.mrb[0].mxu0 %v1597
        %v1748 = vpop.f32.mrb[0].mxu0
        %v1749 = vadd.f32 %v1548, %v1748
        %v1750 = vpop.f32.mrb[0].mxu0
        %v1751 = vadd.f32 %v1552, %v1750
        %v1752 = vpop.f32.mrb[0].mxu0
        %v1753 = vadd.f32 %v1548, %v1752
        %v1754 = vpop.f32.mrb[0].mxu0
        %v1755 = vadd.f32 %v1552, %v1754
        %1756 = vmatprep.mubr.bf16.mxu0 0
        %1757 = vmatmul.mubr.bf16.gmra.mrb[0].mxu0 %v1600
        %v1758 = vpop.f32.mrb[0].mxu0
        %v1759 = vadd.f32 %v1548, %v1758
        %v1760 = vpop.f32.mrb[0].mxu0
        %v1761 = vadd.f32 %v1552, %v1760
        %v1762 = vpop.f32.mrb[0].mxu0
        %v1763 = vadd.f32 %v1548, %v1762
        %v1764 = vpop.f32.mrb[0].mxu0
        %v1765 = vadd.f32 %v1552, %v1764
        %1766 = vmatprep.mubr.bf16.mxu0 0
        %1767 = vmatmul.mubr.bf16.gmra.mrb[0].mxu0 %v1603
        %v1768 = vpop.f32.mrb[0].mxu0
        %v1769 = vadd.f32 %v1548, %v1768
        %v1770 = vpop.f32.mrb[0].mxu0
        %v1771 = vadd.f32 %v1552, %v1770
        %v1772 = vpop.f32.mrb[0].mxu0
        %v1773 = vadd.f32 %v1548, %v1772
        %v1774 = vpop.f32.mrb[0].mxu0
        %v1775 = vadd.f32 %v1552, %v1774
        %1776 = vmatprep.mubr.bf16.mxu0 0
        %1777 = vmatmul.mubr.bf16.gmra.mrb[0].mxu0 %v1606
        %v1778 = vpop.f32.mrb[0].mxu0
        %v1779 = vadd.f32 %v1548, %v1778
        %v1780 = vpop.f32.mrb[0].mxu0
        %v1781 = vadd.f32 %v1552, %v1780
        %v1782 = vpop.f32.mrb[0].mxu0
        %v1783 = vadd.f32 %v1548, %v1782
        %v1784 = vpop.f32.mrb[0].mxu0
        %v1785 = vadd.f32 %v1552, %v1784
        %1786 = vmatprep.mubr.bf16.mxu0 0
        %1787 = vmatmul.mubr.bf16.gmra.mrb[0].mxu0 %v1609
        %v1788 = vpop.f32.mrb[0].mxu0
        %v1789 = vadd.f32 %v1548, %v1788
        %v1790 = vpop.f32.mrb[0].mxu0
        %v1791 = vadd.f32 %v1552, %v1790
        %v1792 = vpop.f32.mrb[0].mxu0
        %v1793 = vadd.f32 %v1548, %v1792
        %v1794 = vpop.f32.mrb[0].mxu0
        %v1795 = vadd.f32 %v1552, %v1794
        %1796 = vmatprep.mubr.bf16.mxu0 0
        %1797 = vmatmul.mubr.bf16.gmra.mrb[0].mxu0 %v1612
        %v1798 = vpop.f32.mrb[0].mxu0
        %v1799 = vadd.f32 %v1548, %v1798
        %v1800 = vpop.f32.mrb[0].mxu0
        %v1801 = vadd.f32 %v1552, %v1800
        %v1802 = vpop.f32.mrb[0].mxu0
        %v1803 = vadd.f32 %v1548, %v1802
        %v1804 = vpop.f32.mrb[0].mxu0
        %v1805 = vadd.f32 %v1552, %v1804
        %1806 = vdwg.mxu0
        %v1807 = vmax.f32 %v1649, 0.0
        %v1808 = vmax.f32 %v1651, 0.0
        %v1809 = vmax.f32 %v1653, 0.0
        %v1810 = vmax.f32 %v1655, 0.0
        %v1811 = vmax.f32 %v1659, 0.0
        %v1812 = vmax.f32 %v1661, 0.0
        %v1813 = vmax.f32 %v1663, 0.0
        %v1814 = vmax.f32 %v1665, 0.0
        %v1815 = vmax.f32 %v1669, 0.0
        %v1816 = vmax.f32 %v1671, 0.0
        %v1817 = vmax.f32 %v1673, 0.0
        %v1818 = vmax.f32 %v1675, 0.0
        %v1819 = vmax.f32 %v1679, 0.0
        %v1820 = vmax.f32 %v1681, 0.0
        %v1821 = vmax.f32 %v1683, 0.0
        %v1822 = vmax.f32 %v1685, 0.0
        %v1823 = vmax.f32 %v1689, 0.0
        %v1824 = vmax.f32 %v1691, 0.0
        %v1825 = vmax.f32 %v1693, 0.0
        %v1826 = vmax.f32 %v1695, 0.0
        %v1827 = vmax.f32 %v1699, 0.0
        %v1828 = vmax.f32 %v1701, 0.0
        %v1829 = vmax.f32 %v1703, 0.0
        %v1830 = vmax.f32 %v1705, 0.0
        %v1831 = vmax.f32 %v1709, 0.0
        %v1832 = vmax.f32 %v1711, 0.0
        %v1833 = vmax.f32 %v1713, 0.0
        %v1834 = vmax.f32 %v1715, 0.0
        %v1835 = vmax.f32 %v1719, 0.0
        %v1836 = vmax.f32 %v1721, 0.0
        %v1837 = vmax.f32 %v1723, 0.0
        %v1838 = vmax.f32 %v1725, 0.0
        %v1839 = vmax.f32 %v1729, 0.0
        %v1840 = vmax.f32 %v1731, 0.0
        %v1841 = vmax.f32 %v1733, 0.0
        %v1842 = vmax.f32 %v1735, 0.0
        %v1843 = vmax.f32 %v1739, 0.0
        %v1844 = vmax.f32 %v1741, 0.0
        %v1845 = vmax.f32 %v1743, 0.0
        %v1846 = vmax.f32 %v1745, 0.0
        %v1847 = vmax.f32 %v1749, 0.0
        %v1848 = vmax.f32 %v1751, 0.0
        %v1849 = vmax.f32 %v1753, 0.0
        %v1850 = vmax.f32 %v1755, 0.0
        %v1851 = vmax.f32 %v1759, 0.0
        %v1852 = vmax.f32 %v1761, 0.0
        %v1853 = vmax.f32 %v1763, 0.0
        %v1854 = vmax.f32 %v1765, 0.0
        %v1855 = vmax.f32 %v1769, 0.0
        %v1856 = vmax.f32 %v1771, 0.0
        %v1857 = vmax.f32 %v1773, 0.0
        %v1858 = vmax.f32 %v1775, 0.0
        %v1859 = vmax.f32 %v1779, 0.0
        %v1860 = vmax.f32 %v1781, 0.0
        %v1861 = vmax.f32 %v1783, 0.0
        %v1862 = vmax.f32 %v1785, 0.0
        %v1863 = vmax.f32 %v1789, 0.0
        %v1864 = vmax.f32 %v1791, 0.0
        %v1865 = vmax.f32 %v1793, 0.0
        %v1866 = vmax.f32 %v1795, 0.0
        %v1867 = vmax.f32 %v1799, 0.0
        %v1868 = vmax.f32 %v1801, 0.0
        %v1869 = vmax.f32 %v1803, 0.0
        %v1870 = vmax.f32 %v1805, 0.0
        %v1871 = vpack.c.bf16 %v1809, %v1807
        %v1872 = vpack.c.bf16 %v1810, %v1808
        %v1873 = vpack.c.bf16 %v1813, %v1811
        %v1874 = vpack.c.bf16 %v1814, %v1812
        %v1875 = vpack.c.bf16 %v1817, %v1815
        %v1876 = vpack.c.bf16 %v1818, %v1816
        %v1877 = vpack.c.bf16 %v1821, %v1819
        %v1878 = vpack.c.bf16 %v1822, %v1820
        %v1879 = vpack.c.bf16 %v1825, %v1823
        %v1880 = vpack.c.bf16 %v1826, %v1824
        %v1881 = vpack.c.bf16 %v1829, %v1827
        %v1882 = vpack.c.bf16 %v1830, %v1828
        %v1883 = vpack.c.bf16 %v1833, %v1831
        %v1884 = vpack.c.bf16 %v1834, %v1832
        %v1885 = vpack.c.bf16 %v1837, %v1835
        %v1886 = vpack.c.bf16 %v1838, %v1836
        %v1887 = vpack.c.bf16 %v1841, %v1839
        %v1888 = vpack.c.bf16 %v1842, %v1840
        %v1889 = vpack.c.bf16 %v1845, %v1843
        %v1890 = vpack.c.bf16 %v1846, %v1844
        %v1891 = vpack.c.bf16 %v1849, %v1847
        %v1892 = vpack.c.bf16 %v1850, %v1848
        %v1893 = vpack.c.bf16 %v1853, %v1851
        %v1894 = vpack.c.bf16 %v1854, %v1852
        %v1895 = vpack.c.bf16 %v1857, %v1855
        %v1896 = vpack.c.bf16 %v1858, %v1856
        %v1897 = vpack.c.bf16 %v1861, %v1859
        %v1898 = vpack.c.bf16 %v1862, %v1860
        %v1899 = vpack.c.bf16 %v1865, %v1863
        %v1900 = vpack.c.bf16 %v1866, %v1864
        %v1901 = vpack.c.bf16 %v1869, %v1867
        %v1902 = vpack.c.bf16 %v1870, %v1868
        %v1903 = vld [vmem:[%s8] sm:$0xf]
        %v1904 = vld [vmem:[%s8 + $0x4] sm:$0xf]
        %v1905 = vld [vmem:[%s8 + $0x8] sm:$0xf]
        %v1906 = vld [vmem:[%s8 + $0xc] sm:$0xf]
        %v1907 = vld [vmem:[%s8 + $0x10] sm:$0xf]
        %v1908 = vld [vmem:[%s8 + $0x14] sm:$0xf]
        %v1909 = vld [vmem:[%s8 + $0x18] sm:$0xf]
        %v1910 = vld [vmem:[%s8 + $0x1c] sm:$0xf]
        %v1911 = vld [vmem:[%s8 + $0x20] sm:$0xf]
        %v1912 = vld [vmem:[%s8 + $0x24] sm:$0xf]
        %v1913 = vld [vmem:[%s8 + $0x28] sm:$0xf]
        %v1914 = vld [vmem:[%s8 + $0x2c] sm:$0xf]
        %v1915 = vld [vmem:[%s8 + $0x30] sm:$0xf]
        %v1916 = vld [vmem:[%s8 + $0x34] sm:$0xf]
        %v1917 = vld [vmem:[%s8 + $0x38] sm:$0xf]
        %v1918 = vld [vmem:[%s8 + $0x3c] sm:$0xf]
        %v1919 = vld [vmem:[%s8 + $0x40] sm:$0xf]
        %v1920 = vld [vmem:[%s8 + $0x44] sm:$0xf]
        %v1921 = vld [vmem:[%s8 + $0x48] sm:$0xf]
        %v1922 = vld [vmem:[%s8 + $0x4c] sm:$0xf]
        %v1923 = vld [vmem:[%s8 + $0x50] sm:$0xf]
        %v1924 = vld [vmem:[%s8 + $0x54] sm:$0xf]
        %v1925 = vld [vmem:[%s8 + $0x58] sm:$0xf]
        %v1926 = vld [vmem:[%s8 + $0x5c] sm:$0xf]
        %v1927 = vld [vmem:[%s8 + $0x60] sm:$0xf]
        %v1928 = vld [vmem:[%s8 + $0x64] sm:$0xf]
        %v1929 = vld [vmem:[%s8 + $0x68] sm:$0xf]
        %v1930 = vld [vmem:[%s8 + $0x6c] sm:$0xf]
        %v1931 = vld [vmem:[%s8 + $0x70] sm:$0xf]
        %v1932 = vld [vmem:[%s8 + $0x74] sm:$0xf]
        %v1933 = vld [vmem:[%s8 + $0x78] sm:$0xf]
        %v1934 = vld [vmem:[%s8 + $0x7c] sm:$0xf]
        %v1935 = vld [vmem:[%s9] sm:$0x1]
        %v1937 = vlaneseq
        %v1938 = vshrl.u32 %v1937, 7
        %v1939 = vsub.s32 0, %v1938
        %v1940 = vrot.slane %v1935, %v1939
        %v1974 = vunpack.c.l.b16 %v1903
        %v1975 = vunpack.c.l.b16 %v1904
        %v1976 = vunpack.c.l.b16 %v1905
        %v1977 = vunpack.c.l.b16 %v1906
        %v1978 = vunpack.c.l.b16 %v1907
        %v1979 = vunpack.c.l.b16 %v1908
        %v1980 = vunpack.c.l.b16 %v1909
        %v1981 = vunpack.c.l.b16 %v1910
        %v1982 = vunpack.c.l.b16 %v1911
        %v1983 = vunpack.c.l.b16 %v1912
        %v1984 = vunpack.c.l.b16 %v1913
        %v1985 = vunpack.c.l.b16 %v1914
        %v1986 = vunpack.c.l.b16 %v1915
        %v1987 = vunpack.c.l.b16 %v1916
        %v1988 = vunpack.c.l.b16 %v1917
        %v1989 = vunpack.c.l.b16 %v1918
        %v1990 = vunpack.c.l.b16 %v1919
        %v1991 = vunpack.c.l.b16 %v1920
        %v1992 = vunpack.c.l.b16 %v1921
        %v1993 = vunpack.c.l.b16 %v1922
        %v1994 = vunpack.c.l.b16 %v1923
        %v1995 = vunpack.c.l.b16 %v1924
        %v1996 = vunpack.c.l.b16 %v1925
        %v1997 = vunpack.c.l.b16 %v1926
        %v1998 = vunpack.c.l.b16 %v1927
        %v1999 = vunpack.c.l.b16 %v1928
        %v2000 = vunpack.c.l.b16 %v1929
        %v2001 = vunpack.c.l.b16 %v1930
        %v2002 = vunpack.c.l.b16 %v1931
        %v2003 = vunpack.c.l.b16 %v1932
        %v2004 = vunpack.c.l.b16 %v1933
        %v2005 = vunpack.c.l.b16 %v1934
        %v2006 = vpack.c.b16 %v1975, %v1974
        %v2007 = vpack.c.b16 %v1977, %v1976
        %v2008 = vpack.c.b16 %v1979, %v1978
        %v2009 = vpack.c.b16 %v1981, %v1980
        %v2010 = vpack.c.b16 %v1983, %v1982
        %v2011 = vpack.c.b16 %v1985, %v1984
        %v2012 = vpack.c.b16 %v1987, %v1986
        %v2013 = vpack.c.b16 %v1989, %v1988
        %v2014 = vpack.c.b16 %v1991, %v1990
        %v2015 = vpack.c.b16 %v1993, %v1992
        %v2016 = vpack.c.b16 %v1995, %v1994
        %v2017 = vpack.c.b16 %v1997, %v1996
        %v2018 = vpack.c.b16 %v1999, %v1998
        %v2019 = vpack.c.b16 %v2001, %v2000
        %v2020 = vpack.c.b16 %v2003, %v2002
        %v2021 = vpack.c.b16 %v2005, %v2004
        %2038 = vmatprep.subr.bf16.mxu0 0
        %2039 = vmatpush1.bf16.msra.mxu0 %v2006
        %2040 = vmatprep.subr.bf16.mxu0 0
        %2041 = vmatpush1.bf16.msra.mxu0 %v2007
        %2042 = vmatprep.subr.bf16.mxu0 0
        %2043 = vmatpush1.bf16.msra.mxu0 %v2008
        %2044 = vmatprep.subr.bf16.mxu0 0
        %2045 = vmatpush1.bf16.msra.mxu0 %v2009
        %2046 = vmatprep.subr.bf16.mxu0 0
        %2047 = vmatpush1.bf16.msra.mxu0 %v2010
        %2048 = vmatprep.subr.bf16.mxu0 0
        %2049 = vmatpush1.bf16.msra.mxu0 %v2011
        %2050 = vmatprep.subr.bf16.mxu0 0
        %2051 = vmatpush1.bf16.msra.mxu0 %v2012
        %2052 = vmatprep.subr.bf16.mxu0 0
        %2053 = vmatpush1.bf16.msra.mxu0 %v2013
        %2054 = vmatprep.subr.bf16.mxu0 0
        %2055 = vmatpush1.bf16.msra.mxu0 %v2014
        %2056 = vmatprep.subr.bf16.mxu0 0
        %2057 = vmatpush1.bf16.msra.mxu0 %v2015
        %2058 = vmatprep.subr.bf16.mxu0 0
        %2059 = vmatpush1.bf16.msra.mxu0 %v2016
        %2060 = vmatprep.subr.bf16.mxu0 0
        %2061 = vmatpush1.bf16.msra.mxu0 %v2017
        %2062 = vmatprep.subr.bf16.mxu0 0
        %2063 = vmatpush1.bf16.msra.mxu0 %v2018
        %2064 = vmatprep.subr.bf16.mxu0 0
        %2065 = vmatpush1.bf16.msra.mxu0 %v2019
        %2066 = vmatprep.subr.bf16.mxu0 0
        %2067 = vmatpush1.bf16.msra.mxu0 %v2020
        %2068 = vmatprep.subr.bf16.mxu0 0
        %2069 = vmatpush1.bf16.msra.mxu0 %v2021
        %2070 = vmatprep.mubr.bf16.mxu0 %v1872
        %2071 = vmatmul.mubr.bf16.gmra.mrb[0].mxu0 %v1871
        %v2072 = vpop.f32.mrb[0].mxu0
        %v2073 = vadd.f32 %v1940, %v2072
        %v2074 = vpop.f32.mrb[0].mxu0
        %v2075 = vpop.f32.mrb[0].mxu0
        %v2076 = vadd.f32 %v1940, %v2075
        %v2077 = vpop.f32.mrb[0].mxu0
        %2078 = vmatprep.mubr.bf16.mxu0 %v1874
        %2079 = vmatmul.mubr.bf16.gmra.mrb[0].mxu0 %v1873
        %v2080 = vpop.f32.mrb[0].mxu0
        %v2081 = vadd.f32 %v1940, %v2080
        %v2082 = vpop.f32.mrb[0].mxu0
        %v2083 = vpop.f32.mrb[0].mxu0
        %v2084 = vadd.f32 %v1940, %v2083
        %v2085 = vpop.f32.mrb[0].mxu0
        %2086 = vmatprep.mubr.bf16.mxu0 %v1876
        %2087 = vmatmul.mubr.bf16.gmra.mrb[0].mxu0 %v1875
        %v2088 = vpop.f32.mrb[0].mxu0
        %v2089 = vadd.f32 %v1940, %v2088
        %v2090 = vpop.f32.mrb[0].mxu0
        %v2091 = vpop.f32.mrb[0].mxu0
        %v2092 = vadd.f32 %v1940, %v2091
        %v2093 = vpop.f32.mrb[0].mxu0
        %2094 = vmatprep.mubr.bf16.mxu0 %v1878
        %2095 = vmatmul.mubr.bf16.gmra.mrb[0].mxu0 %v1877
        %v2096 = vpop.f32.mrb[0].mxu0
        %v2097 = vadd.f32 %v1940, %v2096
        %v2098 = vpop.f32.mrb[0].mxu0
        %v2099 = vpop.f32.mrb[0].mxu0
        %v2100 = vadd.f32 %v1940, %v2099
        %v2101 = vpop.f32.mrb[0].mxu0
        %2102 = vmatprep.mubr.bf16.mxu0 %v1880
        %2103 = vmatmul.mubr.bf16.gmra.mrb[0].mxu0 %v1879
        %v2104 = vpop.f32.mrb[0].mxu0
        %v2105 = vadd.f32 %v1940, %v2104
        %v2106 = vpop.f32.mrb[0].mxu0
        %v2107 = vpop.f32.mrb[0].mxu0
        %v2108 = vadd.f32 %v1940, %v2107
        %v2109 = vpop.f32.mrb[0].mxu0
        %2110 = vmatprep.mubr.bf16.mxu0 %v1882
        %2111 = vmatmul.mubr.bf16.gmra.mrb[0].mxu0 %v1881
        %v2112 = vpop.f32.mrb[0].mxu0
        %v2113 = vadd.f32 %v1940, %v2112
        %v2114 = vpop.f32.mrb[0].mxu0
        %v2115 = vpop.f32.mrb[0].mxu0
        %v2116 = vadd.f32 %v1940, %v2115
        %v2117 = vpop.f32.mrb[0].mxu0
        %2118 = vmatprep.mubr.bf16.mxu0 %v1884
        %2119 = vmatmul.mubr.bf16.gmra.mrb[0].mxu0 %v1883
        %v2120 = vpop.f32.mrb[0].mxu0
        %v2121 = vadd.f32 %v1940, %v2120
        %v2122 = vpop.f32.mrb[0].mxu0
        %v2123 = vpop.f32.mrb[0].mxu0
        %v2124 = vadd.f32 %v1940, %v2123
        %v2125 = vpop.f32.mrb[0].mxu0
        %2126 = vmatprep.mubr.bf16.mxu0 %v1886
        %2127 = vmatmul.mubr.bf16.gmra.mrb[0].mxu0 %v1885
        %v2128 = vpop.f32.mrb[0].mxu0
        %v2129 = vadd.f32 %v1940, %v2128
        %v2130 = vpop.f32.mrb[0].mxu0
        %v2131 = vpop.f32.mrb[0].mxu0
        %v2132 = vadd.f32 %v1940, %v2131
        %v2133 = vpop.f32.mrb[0].mxu0
        %2134 = vmatprep.mubr.bf16.mxu0 %v1888
        %2135 = vmatmul.mubr.bf16.gmra.mrb[0].mxu0 %v1887
        %v2136 = vpop.f32.mrb[0].mxu0
        %v2137 = vadd.f32 %v1940, %v2136
        %v2138 = vpop.f32.mrb[0].mxu0
        %v2139 = vpop.f32.mrb[0].mxu0
        %v2140 = vadd.f32 %v1940, %v2139
        %v2141 = vpop.f32.mrb[0].mxu0
        %2142 = vmatprep.mubr.bf16.mxu0 %v1890
        %2143 = vmatmul.mubr.bf16.gmra.mrb[0].mxu0 %v1889
        %v2144 = vpop.f32.mrb[0].mxu0
        %v2145 = vadd.f32 %v1940, %v2144
        %v2146 = vpop.f32.mrb[0].mxu0
        %v2147 = vpop.f32.mrb[0].mxu0
        %v2148 = vadd.f32 %v1940, %v2147
        %v2149 = vpop.f32.mrb[0].mxu0
        %2150 = vmatprep.mubr.bf16.mxu0 %v1892
        %2151 = vmatmul.mubr.bf16.gmra.mrb[0].mxu0 %v1891
        %v2152 = vpop.f32.mrb[0].mxu0
        %v2153 = vadd.f32 %v1940, %v2152
        %v2154 = vpop.f32.mrb[0].mxu0
        %v2155 = vpop.f32.mrb[0].mxu0
        %v2156 = vadd.f32 %v1940, %v2155
        %v2157 = vpop.f32.mrb[0].mxu0
        %2158 = vmatprep.mubr.bf16.mxu0 %v1894
        %2159 = vmatmul.mubr.bf16.gmra.mrb[0].mxu0 %v1893
        %v2160 = vpop.f32.mrb[0].mxu0
        %v2161 = vadd.f32 %v1940, %v2160
        %v2162 = vpop.f32.mrb[0].mxu0
        %v2163 = vpop.f32.mrb[0].mxu0
        %v2164 = vadd.f32 %v1940, %v2163
        %v2165 = vpop.f32.mrb[0].mxu0
        %2166 = vmatprep.mubr.bf16.mxu0 %v1896
        %2167 = vmatmul.mubr.bf16.gmra.mrb[0].mxu0 %v1895
        %v2168 = vpop.f32.mrb[0].mxu0
        %v2169 = vadd.f32 %v1940, %v2168
        %v2170 = vpop.f32.mrb[0].mxu0
        %v2171 = vpop.f32.mrb[0].mxu0
        %v2172 = vadd.f32 %v1940, %v2171
        %v2173 = vpop.f32.mrb[0].mxu0
        %2174 = vmatprep.mubr.bf16.mxu0 %v1898
        %2175 = vmatmul.mubr.bf16.gmra.mrb[0].mxu0 %v1897
        %v2176 = vpop.f32.mrb[0].mxu0
        %v2177 = vadd.f32 %v1940, %v2176
        %v2178 = vpop.f32.mrb[0].mxu0
        %v2179 = vpop.f32.mrb[0].mxu0
        %v2180 = vadd.f32 %v1940, %v2179
        %v2181 = vpop.f32.mrb[0].mxu0
        %2182 = vmatprep.mubr.bf16.mxu0 %v1900
        %2183 = vmatmul.mubr.bf16.gmra.mrb[0].mxu0 %v1899
        %v2184 = vpop.f32.mrb[0].mxu0
        %v2185 = vadd.f32 %v1940, %v2184
        %v2186 = vpop.f32.mrb[0].mxu0
        %v2187 = vpop.f32.mrb[0].mxu0
        %v2188 = vadd.f32 %v1940, %v2187
        %v2189 = vpop.f32.mrb[0].mxu0
        %2190 = vmatprep.mubr.bf16.mxu0 %v1902
        %2191 = vmatmul.mubr.bf16.gmra.mrb[0].mxu0 %v1901
        %v2192 = vpop.f32.mrb[0].mxu0
        %v2193 = vadd.f32 %v1940, %v2192
        %v2194 = vpop.f32.mrb[0].mxu0
        %v2195 = vpop.f32.mrb[0].mxu0
        %v2196 = vadd.f32 %v1940, %v2195
        %v2197 = vpop.f32.mrb[0].mxu0
        %2198 = vdwg.mxu0
        %2199 = vst [vmem:[%s400] sm:$0xff] %v2073
        %2200 = vst [vmem:[%s400 + $0x8] sm:$0xff] %v2076
        %2201 = vst [vmem:[%s400 + $0x10] sm:$0xff] %v2081
        %2202 = vst [vmem:[%s400 + $0x18] sm:$0xff] %v2084
        %2203 = vst [vmem:[%s400 + $0x20] sm:$0xff] %v2089
        %2204 = vst [vmem:[%s400 + $0x28] sm:$0xff] %v2092
        %2205 = vst [vmem:[%s400 + $0x30] sm:$0xff] %v2097
        %2206 = vst [vmem:[%s400 + $0x38] sm:$0xff] %v2100
        %2207 = vst [vmem:[%s400 + $0x40] sm:$0xff] %v2105
        %2208 = vst [vmem:[%s400 + $0x48] sm:$0xff] %v2108
        %2209 = vst [vmem:[%s400 + $0x50] sm:$0xff] %v2113
        %2210 = vst [vmem:[%s400 + $0x58] sm:$0xff] %v2116
        %2211 = vst [vmem:[%s400 + $0x60] sm:$0xff] %v2121
        %2212 = vst [vmem:[%s400 + $0x68] sm:$0xff] %v2124
        %2213 = vst [vmem:[%s400 + $0x70] sm:$0xff] %v2129
        %2214 = vst [vmem:[%s400 + $0x78] sm:$0xff] %v2132
        %2215 = vst [vmem:[%s400 + $0x80] sm:$0xff] %v2137
        %2216 = vst [vmem:[%s400 + $0x88] sm:$0xff] %v2140
        %2217 = vst [vmem:[%s400 + $0x90] sm:$0xff] %v2145
        %2218 = vst [vmem:[%s400 + $0x98] sm:$0xff] %v2148
        %2219 = vst [vmem:[%s400 + $0xa0] sm:$0xff] %v2153
        %2220 = vst [vmem:[%s400 + $0xa8] sm:$0xff] %v2156
        %2221 = vst [vmem:[%s400 + $0xb0] sm:$0xff] %v2161
        %2222 = vst [vmem:[%s400 + $0xb8] sm:$0xff] %v2164
        %2223 = vst [vmem:[%s400 + $0xc0] sm:$0xff] %v2169
        %2224 = vst [vmem:[%s400 + $0xc8] sm:$0xff] %v2172
        %2225 = vst [vmem:[%s400 + $0xd0] sm:$0xff] %v2177
        %2226 = vst [vmem:[%s400 + $0xd8] sm:$0xff] %v2180
        %2227 = vst [vmem:[%s400 + $0xe0] sm:$0xff] %v2185
        %2228 = vst [vmem:[%s400 + $0xe8] sm:$0xff] %v2188
        %2229 = vst [vmem:[%s400 + $0xf0] sm:$0xff] %v2193
        %2230 = vst [vmem:[%s400 + $0xf8] sm:$0xff] %v2196
        %2231 = vst [vmem:[%s407] sm:$0xff] %v1111
        %2232 = vst [vmem:[%s407 + $0x8] sm:$0xff] %v1114
        %2233 = vst [vmem:[%s407 + $0x10] sm:$0xff] %v1119
        %2234 = vst [vmem:[%s407 + $0x18] sm:$0xff] %v1122
        %2235 = vst [vmem:[%s407 + $0x20] sm:$0xff] %v1127
        %2236 = vst [vmem:[%s407 + $0x28] sm:$0xff] %v1130
        %2237 = vst [vmem:[%s407 + $0x30] sm:$0xff] %v1135
        %2238 = vst [vmem:[%s407 + $0x38] sm:$0xff] %v1138
        %2239 = vst [vmem:[%s407 + $0x40] sm:$0xff] %v1143
        %2240 = vst [vmem:[%s407 + $0x48] sm:$0xff] %v1146
        %2241 = vst [vmem:[%s407 + $0x50] sm:$0xff] %v1151
        %2242 = vst [vmem:[%s407 + $0x58] sm:$0xff] %v1154
        %2243 = vst [vmem:[%s407 + $0x60] sm:$0xff] %v1159
        %2244 = vst [vmem:[%s407 + $0x68] sm:$0xff] %v1162
        %2245 = vst [vmem:[%s407 + $0x70] sm:$0xff] %v1167
        %2246 = vst [vmem:[%s407 + $0x78] sm:$0xff] %v1170
        %2247 = vst [vmem:[%s407 + $0x80] sm:$0xff] %v1175
        %2248 = vst [vmem:[%s407 + $0x88] sm:$0xff] %v1178
        %2249 = vst [vmem:[%s407 + $0x90] sm:$0xff] %v1183
        %2250 = vst [vmem:[%s407 + $0x98] sm:$0xff] %v1186
        %2251 = vst [vmem:[%s407 + $0xa0] sm:$0xff] %v1191
        %2252 = vst [vmem:[%s407 + $0xa8] sm:$0xff] %v1194
        %2253 = vst [vmem:[%s407 + $0xb0] sm:$0xff] %v1199
        %2254 = vst [vmem:[%s407 + $0xb8] sm:$0xff] %v1202
        %2255 = vst [vmem:[%s407 + $0xc0] sm:$0xff] %v1207
        %2256 = vst [vmem:[%s407 + $0xc8] sm:$0xff] %v1210
        %2257 = vst [vmem:[%s407 + $0xd0] sm:$0xff] %v1215
        %2258 = vst [vmem:[%s407 + $0xd8] sm:$0xff] %v1218
        %2259 = vst [vmem:[%s407 + $0xe0] sm:$0xff] %v1223
        %2260 = vst [vmem:[%s407 + $0xe8] sm:$0xff] %v1226
        %2261 = vst [vmem:[%s407 + $0xf0] sm:$0xff] %v1231
        %2262 = vst [vmem:[%s407 + $0xf8] sm:$0xff] %v1234
        %s2263 = sand.u32 %s257, 1
        %s2264 = scalar_lea.sflag [#allocation3], %s2263
        %s2265 = sand.u32 %s257, 1
        %s2266 = smul.addr %s2265, 256
        %s2267 = scalar_lea.vmem [#allocation2], %s2266
        %s2268 = sand.u32 %s283, 1
        %s2269 = scalar_lea.sflag [#allocation5], %s2268
        %s2270 = sand.u32 %s283, 1
        %s2271 = smul.addr %s2270, 256
        %s2272 = scalar_lea.vmem [#allocation4], %s2271
        // Predicated region
        $region61: #{tpu_custom_call.1} parent=59 // pred_check
          %p2273 = pneg %p267
        $region62: #{tpu_custom_call.1} parent=59 // pred_check_branch
          %2275 = sbr.rel (%p2273) target = $region64
        $region63: #{tpu_custom_call.1} parent=59 // pred_region
          %s2276 = smul.u32 32, %s29
          %s2278 = ssub.s32 4096, 4096
          %2279 = vsyncadd %s2264, %s2278
          %s2280 = smul.addr %s2276, 128
          %s2281 = scalar_lea.hbm %s10, %s2280
          %s2282 = sshll.u32 %s2267, 4
          %s2283 = int_to_ptr.vmem [resolvable:$true] %s2282
          %2288 = dma.vmem_to_hbm [thread:$0]  %s2283, 4096, %s2281, %s2264, 128, 128, 8
        $region64: #{tpu_custom_call.1} parent=59 // pred_fallthru
          _
        // Predicated region
        $region65: #{tpu_custom_call.1} parent=59 // pred_check
          %p2289 = pneg %p293
        $region66: #{tpu_custom_call.1} parent=59 // pred_check_branch
          %2291 = sbr.rel (%p2289) target = $region68
        $region67: #{tpu_custom_call.1} parent=59 // pred_region
          %s2292 = smul.u32 32, %s29
          %s2294 = ssub.s32 4096, 4096
          %2295 = vsyncadd %s2269, %s2294
          %s2296 = smul.addr %s2292, 128
          %s2297 = scalar_lea.hbm %s11, %s2296
          %s2298 = sshll.u32 %s2272, 4
          %s2299 = int_to_ptr.vmem [resolvable:$true] %s2298
          %2304 = dma.vmem_to_hbm [thread:$0]  %s2299, 4096, %s2297, %s2269, 128, 128, 8
        $region68: #{tpu_custom_call.1} parent=59 // pred_fallthru
          _
      $region60: #{tpu_custom_call.1} parent=5 // pred_fallthru
        _
      %p2305 = scmp.le.s32.totalorder 2, %s24
      // Predicated region
      $region69: #{tpu_custom_call.1} parent=5 // pred_check
        %p2306 = pneg %p2305
      $region70: #{tpu_custom_call.1} parent=5 // pred_check_branch
        %2308 = sbr.rel (%p2306) target = $region72
      $region71: #{tpu_custom_call.1} parent=5 // pred_region
        %s2309 = ssub.s32 %s24, 2
        // Predicated region
        $region73: #{tpu_custom_call.1} parent=71 // pred_check
          %p2310 = pneg %p273
        $region74: #{tpu_custom_call.1} parent=71 // pred_check_branch
          %2312 = sbr.rel (%p2310) target = $region76
        $region75: #{tpu_custom_call.1} parent=71 // pred_region
          %s2313 = sand.u32 %s258, 1
          %s2314 = scalar_lea.sflag [#allocation3], %s2313
          %s2315 = sand.u32 %s258, 1
          %s2316 = smul.addr %s2315, 256
          %s2317 = scalar_lea.vmem [#allocation2], %s2316
          %2318 = dma.done %s2314, 4096
        $region76: #{tpu_custom_call.1} parent=71 // pred_fallthru
          _
        // Predicated region
        $region77: #{tpu_custom_call.1} parent=71 // pred_check
          %p2319 = pneg %p299
        $region78: #{tpu_custom_call.1} parent=71 // pred_check_branch
          %2321 = sbr.rel (%p2319) target = $region80
        $region79: #{tpu_custom_call.1} parent=71 // pred_region
          %s2322 = sand.u32 %s284, 1
          %s2323 = scalar_lea.sflag [#allocation5], %s2322
          %s2324 = sand.u32 %s284, 1
          %s2325 = smul.addr %s2324, 256
          %s2326 = scalar_lea.vmem [#allocation4], %s2325
          %2327 = dma.done %s2323, 4096
        $region80: #{tpu_custom_call.1} parent=71 // pred_fallthru
          _
      $region72: #{tpu_custom_call.1} parent=5 // pred_fallthru
        _
    $region6: #{tpu_custom_call.1} parent=1 // loop_footer
      %s28 = sadd.s32 1, %s24
    $region7: #{tpu_custom_call.1} parent=1 // loop_footer_branch
      %23 = sbr.rel target = $region3
    $region8: #{tpu_custom_call.1} parent=1 // loop_exit
      _
    %2328 = vsyncpa [#allocation3], 1
    %s2329 = scalar_lea.sflag [#allocation3], 1
    %2330 = vsyncpa %s2329, 1
    %2331 = vsyncpa [#allocation5], 1
    %s2332 = scalar_lea.sflag [#allocation5], 1
    %2333 = vsyncpa %s2332, 1

</llo_original>
